<compile_context>
chip_gen: v6e
topology: v6e:2x2x1
jax: 0.10.0
libtpu: 0.0.40
codegen_flags: <defaults>
</compile_context>

<pallas_src>
import jax
import jax.numpy as jnp
import numpy as np
from jax.experimental import pallas as pl
from jax.experimental.pallas import tpu as pltpu

# ---------------------------------------------------------------------------
# Model hyper-parameters (small, consistent with the module's __init__ shapes)
# ---------------------------------------------------------------------------
BATCH = 2
SEQ = 8
N_TOK = BATCH * SEQ   # 16 tokens total (batch folded into tokens)
D_IN = 4              # raw input feature dim fed to the transformer
D_MODEL = 32          # pretrained_transformer.config['d_model']
NUM_HEADS = 4
D_HEAD = D_MODEL // NUM_HEADS      # 8
D_FF_TRANS = 64       # transformer FFN hidden size
DIM_FF = 64           # projection head hidden size
DIM_OUT = 16          # projection head output size
LN_EPS = 1e-5
INV_SCALE = float(1.0 / np.sqrt(D_HEAD))
NEG_INF = -1e30
APPROX_RECIP = True   # set False for exact softmax reciprocal (tighter tolerances)

# Packed-slab / output layout -----------------------------------------------
SLAB_COLS = 128                    # lane-dense slab width
OUT_PAD = 128                      # padded output lanes (full-vreg store)
OUT_ROWS = 8                       # padded output sublanes
S_COLS = NUM_HEADS * N_TOK         # 64: stacked score-matrix width

# slab row offsets (every block starts on an 8-row boundary)
W_IN_OFF = 0                        # (D_IN,      D_MODEL)
W_QKV_OFF = W_IN_OFF + 8            # (D_MODEL, 3*D_MODEL)   Wq pre-scaled
W_O_OFF = W_QKV_OFF + D_MODEL       # (D_MODEL,   D_MODEL)
W_FF1_OFF = W_O_OFF + D_MODEL       # (D_MODEL,   D_FF_TRANS)
W_FF2_OFF = W_FF1_OFF + D_MODEL     # (D_FF_TRANS,D_MODEL)
W_P1_OFF = W_FF2_OFF + D_FF_TRANS   # (D_MODEL,   DIM_FF)
W_P2_OFF = W_P1_OFF + D_MODEL       # (DIM_FF,    OUT_PAD)
BIAS_OFF = W_P2_OFF + DIM_FF        # 16 rows of biases / LN params
KBD_OFF = BIAS_OFF + 16             # (D_MODEL, S_COLS)  blockdiag mask for k^T
VBD_OFF = KBD_OFF + D_MODEL         # (S_COLS, D_MODEL)  blockdiag mask for v (also = per-head sum matrix)
AMASK_OFF = VBD_OFF + S_COLS        # (N_TOK, S_COLS)    additive batch mask (0 / -1e30)
POOL_OFF = AMASK_OFF + N_TOK        # (OUT_ROWS, N_TOK)  mean-pool matrix (rows >= BATCH are zero)
SLAB_ROWS = POOL_OFF + OUT_ROWS     # 400

# bias row indices (relative to BIAS_OFF)
B_IN_ROW, B_QKV_ROW, B_O_ROW = 0, 1, 2
LN1_G_ROW, LN1_B_ROW = 3, 4
B_FF1_ROW, B_FF2_ROW = 5, 6
LN2_G_ROW, LN2_B_ROW = 7, 8
B_P1_ROW, B_P2_ROW = 9, 10


def _layernorm(x, g, b):
    mu = jnp.mean(x, axis=-1, keepdims=True)
    var = jnp.mean((x - mu) ** 2, axis=-1, keepdims=True)
    return (x - mu) * jax.lax.rsqrt(var + LN_EPS) * g + b


# ---------------------------------------------------------------------------
# Kernel: whole problem in one invocation, everything resident in VMEM
# ---------------------------------------------------------------------------
def transformer_proj_kernel(x_ref, p_ref, out_ref):
    x = x_ref[...]                                                  # (N_TOK, D_IN)

    # --- static slices of the packed slab (no extra DMA) -------------------
    w_in = p_ref[W_IN_OFF:W_IN_OFF + D_IN, 0:D_MODEL]
    w_qkv = p_ref[W_QKV_OFF:W_QKV_OFF + D_MODEL, 0:3 * D_MODEL]
    w_o = p_ref[W_O_OFF:W_O_OFF + D_MODEL, 0:D_MODEL]
    w_ff1 = p_ref[W_FF1_OFF:W_FF1_OFF + D_MODEL, 0:D_FF_TRANS]
    w_ff2 = p_ref[W_FF2_OFF:W_FF2_OFF + D_FF_TRANS, 0:D_MODEL]
    w_p1 = p_ref[W_P1_OFF:W_P1_OFF + D_MODEL, 0:DIM_FF]
    w_p2 = p_ref[W_P2_OFF:W_P2_OFF + DIM_FF, 0:OUT_PAD]

    def brow(r, n):
        return p_ref[BIAS_OFF + r:BIAS_OFF + r + 1, 0:n]

    b_in = brow(B_IN_ROW, D_MODEL)
    b_qkv = brow(B_QKV_ROW, 3 * D_MODEL)
    b_o = brow(B_O_ROW, D_MODEL)
    ln1_g, ln1_b = brow(LN1_G_ROW, D_MODEL), brow(LN1_B_ROW, D_MODEL)
    b_ff1, b_ff2 = brow(B_FF1_ROW, D_FF_TRANS), brow(B_FF2_ROW, D_MODEL)
    ln2_g, ln2_b = brow(LN2_G_ROW, D_MODEL), brow(LN2_B_ROW, D_MODEL)
    b_p1, b_p2 = brow(B_P1_ROW, DIM_FF), brow(B_P2_ROW, OUT_PAD)

    kbd_mask = p_ref[KBD_OFF:KBD_OFF + D_MODEL, 0:S_COLS]           # (32, 64)
    vbd_mask = p_ref[VBD_OFF:VBD_OFF + S_COLS, 0:D_MODEL]           # (64, 32)
    attn_add = p_ref[AMASK_OFF:AMASK_OFF + N_TOK, 0:S_COLS]         # (16, 64)
    pool = p_ref[POOL_OFF:POOL_OFF + OUT_ROWS, 0:N_TOK]             # (8, 16)

    # ---- input projection + fused QKV (1/sqrt(d_head) folded into Wq/bq) --
    h = jnp.dot(x, w_in, preferred_element_type=jnp.float32) + b_in       # (16, 32)
    qkv = jnp.dot(h, w_qkv, preferred_element_type=jnp.float32) + b_qkv   # (16, 96)
    q = qkv[:, 0:D_MODEL]
    k = qkv[:, D_MODEL:2 * D_MODEL]
    v = qkv[:, 2 * D_MODEL:3 * D_MODEL]

    # ---- block-diagonal multi-head attention (all heads, whole batch) -----
    kT = k.T                                                        # (32, 16) one XLU transpose
    k_bd = jnp.concatenate([kT] * NUM_HEADS, axis=1) * kbd_mask     # (32, 64) blockdiag(k_h^T)
    v_bd = jnp.concatenate([v] * NUM_HEADS, axis=0) * vbd_mask      # (64, 32) blockdiag(v_h)

    s = jnp.dot(q, k_bd, preferred_element_type=jnp.float32) + attn_add   # (16, 64)
    # Global row-max is a valid softmax shift per 16-column head block (same
    # constant within each block); scores are O(1) here so no block underflows.
    p = jnp.exp(s - jnp.max(s, axis=-1, keepdims=True))
    pv = jnp.dot(p, v_bd, preferred_element_type=jnp.float32)             # (16, 32) head-concatenated
    den = jnp.dot(p, vbd_mask, preferred_element_type=jnp.float32)        # (16, 32) per-head row sums
    if APPROX_RECIP:
        attn = pv * pl.reciprocal(den, approx=True)
    else:
        attn = pv / den
    attn = jnp.dot(attn, w_o, preferred_element_type=jnp.float32) + b_o

    h = _layernorm(h + attn, ln1_g, ln1_b)

    # ---- transformer FFN ----------------------------------------------------
    ff = jnp.maximum(jnp.dot(h, w_ff1, preferred_element_type=jnp.float32) + b_ff1, 0.0)
    ff = jnp.dot(ff, w_ff2, preferred_element_type=jnp.float32) + b_ff2
    h = _layernorm(h + ff, ln2_g, ln2_b)

    # ---- mean pool over sequence via precomputed pooling matrix ------------
    emb = jnp.dot(pool, h, preferred_element_type=jnp.float32)            # (8, 32)

    # ---- projection head: Linear -> ReLU -> Linear (padded to 128 lanes) ---
    p1 = jnp.maximum(jnp.dot(emb, w_p1, preferred_element_type=jnp.float32) + b_p1, 0.0)
    out_ref[...] = jnp.dot(p1, w_p2, preferred_element_type=jnp.float32) + b_p2  # (8, 128)


# ---------------------------------------------------------------------------
# Host-side parameter packing: 22 tensors + constants -> ONE lane-dense slab.
# Called ONCE at init (hoisted out of the forward path).
# ---------------------------------------------------------------------------
def pack_params(params):
    (w_in, b_in, wq, bq, wk, bk, wv, bv, wo, bo, ln1_g, ln1_b,
     w_ff1, b_ff1, w_ff2, b_ff2, ln2_g, ln2_b, w_p1, b_p1, w_p2, b_p2) = params

    # fold the 1/sqrt(d_head) attention scale into the Q projection
    wq = wq * INV_SCALE
    bq = bq * INV_SCALE

    w_qkv = jnp.concatenate([wq, wk, wv], axis=1)              # (32, 96)
    b_qkv = jnp.concatenate([bq, bk, bv], axis=1)              # (1, 96)
    w_p2p = jnp.pad(w_p2, ((0, 0), (0, OUT_PAD - DIM_OUT)))    # (64, 128)
    b_p2p = jnp.pad(b_p2, ((0, 0), (0, OUT_PAD - DIM_OUT)))    # (1, 128)

    def pad_block(a, rows):
        a = jnp.asarray(a, jnp.float32)
        return jnp.pad(a, ((0, rows - a.shape[0]), (0, SLAB_COLS - a.shape[1])))

    bias_rows = [b_in, b_qkv, bo, ln1_g, ln1_b, b_ff1, b_ff2, ln2_g, ln2_b, b_p1, b_p2p]
    bias_blk = jnp.concatenate(
        [jnp.pad(b, ((0, 0), (0, SLAB_COLS - b.shape[1]))) for b in bias_rows], axis=0)
    bias_blk = jnp.pad(bias_blk, ((0, (KBD_OFF - BIAS_OFF) - bias_blk.shape[0]), (0, 0)))

    # ---- precomputed constants ---------------------------------------------
    r = np.arange(D_MODEL)[:, None]
    c = np.arange(S_COLS)[None, :]
    kbd_mask = ((r // D_HEAD) == (c // N_TOK)).astype(np.float32)          # (32, 64)
    r = np.arange(S_COLS)[:, None]
    c = np.arange(D_MODEL)[None, :]
    vbd_mask = ((r // N_TOK) == (c // D_HEAD)).astype(np.float32)          # (64, 32)
    rq = np.arange(N_TOK)[:, None]
    ck = np.arange(S_COLS)[None, :]
    attn_add = np.where((rq // SEQ) == ((ck % N_TOK) // SEQ),
                        0.0, NEG_INF).astype(np.float32)                   # (16, 64)
    pool = np.zeros((OUT_ROWS, N_TOK), np.float32)
    for b in range(BATCH):
        pool[b, b * SEQ:(b + 1) * SEQ] = 1.0 / SEQ                         # (8, 16)

    slab = jnp.concatenate([
        pad_block(w_in, W_QKV_OFF - W_IN_OFF),
        pad_block(w_qkv, W_O_OFF - W_QKV_OFF),
        pad_block(wo, W_FF1_OFF - W_O_OFF),
        pad_block(w_ff1, W_FF2_OFF - W_FF1_OFF),
        pad_block(w_ff2, W_P1_OFF - W_FF2_OFF),
        pad_block(w_p1, W_P2_OFF - W_P1_OFF),
        pad_block(w_p2p, BIAS_OFF - W_P2_OFF),
        bias_blk,
        pad_block(kbd_mask, VBD_OFF - KBD_OFF),
        pad_block(vbd_mask, AMASK_OFF - VBD_OFF),
        pad_block(attn_add, POOL_OFF - AMASK_OFF),
        pad_block(pool, SLAB_ROWS - POOL_OFF),
    ], axis=0)
    assert slab.shape == (SLAB_ROWS, SLAB_COLS), slab.shape
    return slab


# ---------------------------------------------------------------------------
# Wrapper: grid-less pallas_call, whole arrays resident in VMEM
# ---------------------------------------------------------------------------
_fwd_call = pl.pallas_call(
    transformer_proj_kernel,
    out_shape=jax.ShapeDtypeStruct((OUT_ROWS, OUT_PAD), jnp.float32),
    in_specs=[pl.BlockSpec(memory_space=pltpu.MemorySpace.VMEM),
              pl.BlockSpec(memory_space=pltpu.MemorySpace.VMEM)],
    out_specs=pl.BlockSpec(memory_space=pltpu.MemorySpace.VMEM),
)


@jax.jit
def pretrained_transformer_model(x, slab):
    """x: (BATCH, SEQ, D_IN) float32; slab: packed params. Returns (BATCH, DIM_OUT)."""
    x2 = x.reshape(N_TOK, D_IN)
    out_pad = _fwd_call(x2, slab)
    return out_pad[:BATCH, :DIM_OUT]


# ---------------------------------------------------------------------------
# Pure-JAX reference (same math) for a sanity check
# ---------------------------------------------------------------------------
def reference_forward(x, params):
    (w_in, b_in, wq, bq, wk, bk, wv, bv, wo, bo, ln1_g, ln1_b,
     w_ff1, b_ff1, w_ff2, b_ff2, ln2_g, ln2_b, w_p1, b_p1, w_p2, b_p2) = params

    def one(xb):
        h = xb @ w_in + b_in
        q, k, v = h @ wq + bq, h @ wk + bk, h @ wv + bv
        outs = []
        for hd in range(NUM_HEADS):
            sl = slice(hd * D_HEAD, (hd + 1) * D_HEAD)
            s = (q[:, sl] @ k[:, sl].T) / np.sqrt(D_HEAD)
            p = jax.nn.softmax(s, axis=-1)
            outs.append(p @ v[:, sl])
        attn = jnp.concatenate(outs, axis=-1) @ wo + bo
        h = _layernorm(h + attn, ln1_g, ln1_b)
        ff = jnp.maximum(h @ w_ff1 + b_ff1, 0.0) @ w_ff2 + b_ff2
        h = _layernorm(h + ff, ln2_g, ln2_b)
        emb = jnp.mean(h, axis=0, keepdims=True)
        return (jnp.maximum(emb @ w_p1 + b_p1, 0.0) @ w_p2 + b_p2)[0]

    return jax.vmap(one)(x)


# ---------------------------------------------------------------------------
# Deterministic parameter init
# ---------------------------------------------------------------------------
def init_params(key):
    keys = iter(jax.random.split(key, 32))

    def dense(fan_in, fan_out):
        w = jax.random.normal(next(keys), (fan_in, fan_out), jnp.float32) / np.sqrt(fan_in)
        b = 0.01 * jax.random.normal(next(keys), (1, fan_out), jnp.float32)
        return w, b

    w_in, b_in = dense(D_IN, D_MODEL)
    wq, bq = dense(D_MODEL, D_MODEL)
    wk, bk = dense(D_MODEL, D_MODEL)
    wv, bv = dense(D_MODEL, D_MODEL)
    wo, bo = dense(D_MODEL, D_MODEL)
    ln1_g = jnp.ones((1, D_MODEL), jnp.float32)
    ln1_b = jnp.zeros((1, D_MODEL), jnp.float32)
    w_ff1, b_ff1 = dense(D_MODEL, D_FF_TRANS)
    w_ff2, b_ff2 = dense(D_FF_TRANS, D_MODEL)
    ln2_g = jnp.ones((1, D_MODEL), jnp.float32)
    ln2_b = jnp.zeros((1, D_MODEL), jnp.float32)
    w_p1, b_p1 = dense(D_MODEL, DIM_FF)
    w_p2, b_p2 = dense(DIM_FF, DIM_OUT)

    return (w_in, b_in, wq, bq, wk, bk, wv, bv, wo, bo, ln1_g, ln1_b,
            w_ff1, b_ff1, w_ff2, b_ff2, ln2_g, ln2_b, w_p1, b_p1, w_p2, b_p2)


if __name__ == "__main__":
    key = jax.random.PRNGKey(0)
    pkey, xkey = jax.random.split(key)
    params = init_params(pkey)
    x = jax.random.normal(xkey, (BATCH, SEQ, D_IN), jnp.float32)

    # Pack once at init time (hoisted out of the per-call forward path).
    slab = jax.block_until_ready(pack_params(params))

    out = jax.block_until_ready(pretrained_transformer_model(x, slab))
    ref = jax.block_until_ready(reference_forward(x, params))

    assert out.shape == (BATCH, DIM_OUT), out.shape
    assert np.allclose(np.asarray(out), np.asarray(ref), rtol=5e-3, atol=5e-3), (
        "Pallas output mismatch vs reference")

    print("KERNEL_OK")
</pallas_src>

<mosaic_0001>
module attributes {stable_mosaic.version = 11 : i64} {
  func.func @transformer_proj_kernel(%arg0: memref<16x4xf32, #tpu.memory_space<vmem>>, %arg1: memref<400x128xf32, #tpu.memory_space<vmem>>, %arg2: memref<8x128xf32, #tpu.memory_space<vmem>>) attributes {dimension_semantics = [], scalar_prefetch = 0 : i64, scratch_operands = 0 : i64, tpu.core_type = #tpu.core_type<tc>} {
    %c0 = arith.constant 0 : index
    %c0_0 = arith.constant 0 : index
    %0 = vector.load %arg0[%c0, %c0_0] : memref<16x4xf32, #tpu.memory_space<vmem>>, vector<16x4xf32>
    %c0_1 = arith.constant 0 : index
    %c0_2 = arith.constant 0 : index
    %1 = vector.load %arg1[%c0_1, %c0_2] : memref<400x128xf32, #tpu.memory_space<vmem>>, vector<4x32xf32>
    %c8 = arith.constant 8 : index
    %c0_3 = arith.constant 0 : index
    %2 = vector.load %arg1[%c8, %c0_3] : memref<400x128xf32, #tpu.memory_space<vmem>>, vector<32x96xf32>
    %c40 = arith.constant 40 : index
    %c0_4 = arith.constant 0 : index
    %3 = vector.load %arg1[%c40, %c0_4] : memref<400x128xf32, #tpu.memory_space<vmem>>, vector<32x32xf32>
    %c72 = arith.constant 72 : index
    %c0_5 = arith.constant 0 : index
    %4 = vector.load %arg1[%c72, %c0_5] : memref<400x128xf32, #tpu.memory_space<vmem>>, vector<32x64xf32>
    %c104 = arith.constant 104 : index
    %c0_6 = arith.constant 0 : index
    %5 = vector.load %arg1[%c104, %c0_6] : memref<400x128xf32, #tpu.memory_space<vmem>>, vector<64x32xf32>
    %c168 = arith.constant 168 : index
    %c0_7 = arith.constant 0 : index
    %6 = vector.load %arg1[%c168, %c0_7] : memref<400x128xf32, #tpu.memory_space<vmem>>, vector<32x64xf32>
    %c200 = arith.constant 200 : index
    %c0_8 = arith.constant 0 : index
    %7 = vector.load %arg1[%c200, %c0_8] : memref<400x128xf32, #tpu.memory_space<vmem>>, vector<64x128xf32>
    %c264 = arith.constant 264 : index
    %c0_9 = arith.constant 0 : index
    %8 = vector.load %arg1[%c264, %c0_9] : memref<400x128xf32, #tpu.memory_space<vmem>>, vector<1x32xf32>
    %c265 = arith.constant 265 : index
    %c0_10 = arith.constant 0 : index
    %9 = vector.load %arg1[%c265, %c0_10] : memref<400x128xf32, #tpu.memory_space<vmem>>, vector<1x96xf32>
    %c266 = arith.constant 266 : index
    %c0_11 = arith.constant 0 : index
    %10 = vector.load %arg1[%c266, %c0_11] : memref<400x128xf32, #tpu.memory_space<vmem>>, vector<1x32xf32>
    %c267 = arith.constant 267 : index
    %c0_12 = arith.constant 0 : index
    %11 = vector.load %arg1[%c267, %c0_12] : memref<400x128xf32, #tpu.memory_space<vmem>>, vector<1x32xf32>
    %c268 = arith.constant 268 : index
    %c0_13 = arith.constant 0 : index
    %12 = vector.load %arg1[%c268, %c0_13] : memref<400x128xf32, #tpu.memory_space<vmem>>, vector<1x32xf32>
    %c269 = arith.constant 269 : index
    %c0_14 = arith.constant 0 : index
    %13 = vector.load %arg1[%c269, %c0_14] : memref<400x128xf32, #tpu.memory_space<vmem>>, vector<1x64xf32>
    %c270 = arith.constant 270 : index
    %c0_15 = arith.constant 0 : index
    %14 = vector.load %arg1[%c270, %c0_15] : memref<400x128xf32, #tpu.memory_space<vmem>>, vector<1x32xf32>
    %c271 = arith.constant 271 : index
    %c0_16 = arith.constant 0 : index
    %15 = vector.load %arg1[%c271, %c0_16] : memref<400x128xf32, #tpu.memory_space<vmem>>, vector<1x32xf32>
    %c272 = arith.constant 272 : index
    %c0_17 = arith.constant 0 : index
    %16 = vector.load %arg1[%c272, %c0_17] : memref<400x128xf32, #tpu.memory_space<vmem>>, vector<1x32xf32>
    %c273 = arith.constant 273 : index
    %c0_18 = arith.constant 0 : index
    %17 = vector.load %arg1[%c273, %c0_18] : memref<400x128xf32, #tpu.memory_space<vmem>>, vector<1x64xf32>
    %c274 = arith.constant 274 : index
    %c0_19 = arith.constant 0 : index
    %18 = vector.load %arg1[%c274, %c0_19] : memref<400x128xf32, #tpu.memory_space<vmem>>, vector<1x128xf32>
    %c280 = arith.constant 280 : index
    %c0_20 = arith.constant 0 : index
    %19 = vector.load %arg1[%c280, %c0_20] : memref<400x128xf32, #tpu.memory_space<vmem>>, vector<32x64xf32>
    %c312 = arith.constant 312 : index
    %c0_21 = arith.constant 0 : index
    %20 = vector.load %arg1[%c312, %c0_21] : memref<400x128xf32, #tpu.memory_space<vmem>>, vector<64x32xf32>
    %c376 = arith.constant 376 : index
    %c0_22 = arith.constant 0 : index
    %21 = vector.load %arg1[%c376, %c0_22] : memref<400x128xf32, #tpu.memory_space<vmem>>, vector<16x64xf32>
    %c392 = arith.constant 392 : index
    %c0_23 = arith.constant 0 : index
    %22 = vector.load %arg1[%c392, %c0_23] : memref<400x128xf32, #tpu.memory_space<vmem>>, vector<8x16xf32>
    %cst = arith.constant dense<0.000000e+00> : vector<16x32xf32>
    %23 = tpu.matmul %0, %1, %cst {dimension_numbers = #tpu.dot_dimension_numbers<[1], [0], [0], [1], [0, 0, 1, 1], [], []>} : vector<16x4xf32>, vector<4x32xf32>, vector<16x32xf32> -> vector<16x32xf32>
    %24 = vector.broadcast %8 : vector<1x32xf32> to vector<16x32xf32>
    %25 = arith.addf %23, %24 : vector<16x32xf32>
    %cst_24 = arith.constant dense<0.000000e+00> : vector<16x96xf32>
    %26 = tpu.matmul %25, %2, %cst_24 {dimension_numbers = #tpu.dot_dimension_numbers<[1], [0], [0], [1], [0, 0, 1, 1], [], []>} : vector<16x32xf32>, vector<32x96xf32>, vector<16x96xf32> -> vector<16x96xf32>
    %27 = vector.broadcast %9 : vector<1x96xf32> to vector<16x96xf32>
    %28 = arith.addf %26, %27 : vector<16x96xf32>
    %29 = vector.extract_strided_slice %28 {offsets = [0, 0], sizes = [16, 32], strides = [1, 1]} : vector<16x96xf32> to vector<16x32xf32>
    %30 = vector.extract_strided_slice %28 {offsets = [0, 32], sizes = [16, 32], strides = [1, 1]} : vector<16x96xf32> to vector<16x32xf32>
    %31 = vector.extract_strided_slice %28 {offsets = [0, 64], sizes = [16, 32], strides = [1, 1]} : vector<16x96xf32> to vector<16x32xf32>
    %32 = tpu.transpose %30, [1, 0] : vector<16x32xf32> -> vector<32x16xf32>
    %33 = tpu.concatenate %32, %32, %32, %32 in 1 : vector<32x16xf32>, vector<32x16xf32>, vector<32x16xf32>, vector<32x16xf32> -> vector<32x64xf32>
    %34 = arith.mulf %33, %19 : vector<32x64xf32>
    %35 = tpu.concatenate %31, %31, %31, %31 in 0 : vector<16x32xf32>, vector<16x32xf32>, vector<16x32xf32>, vector<16x32xf32> -> vector<64x32xf32>
    %36 = arith.mulf %35, %20 : vector<64x32xf32>
    %cst_25 = arith.constant dense<0.000000e+00> : vector<16x64xf32>
    %37 = tpu.matmul %29, %34, %cst_25 {dimension_numbers = #tpu.dot_dimension_numbers<[1], [0], [0], [1], [0, 0, 1, 1], [], []>} : vector<16x32xf32>, vector<32x64xf32>, vector<16x64xf32> -> vector<16x64xf32>
    %38 = arith.addf %37, %21 : vector<16x64xf32>
    %cst_26 = arith.constant dense<0xFF800000> : vector<16xf32>
    %39 = vector.multi_reduction <maximumf>, %38, %cst_26 [1] : vector<16x64xf32> to vector<16xf32>
    %40 = vector.shape_cast %39 : vector<16xf32> to vector<16x1xf32>
    %41 = vector.broadcast %40 : vector<16x1xf32> to vector<16x64xf32>
    %42 = arith.subf %38, %41 : vector<16x64xf32>
    %43 = math.exp %42 : vector<16x64xf32>
    %cst_27 = arith.constant dense<0.000000e+00> : vector<16x32xf32>
    %44 = tpu.matmul %43, %36, %cst_27 {dimension_numbers = #tpu.dot_dimension_numbers<[1], [0], [0], [1], [0, 0, 1, 1], [], []>} : vector<16x64xf32>, vector<64x32xf32>, vector<16x32xf32> -> vector<16x32xf32>
    %cst_28 = arith.constant dense<0.000000e+00> : vector<16x32xf32>
    %45 = tpu.matmul %43, %20, %cst_28 {dimension_numbers = #tpu.dot_dimension_numbers<[1], [0], [0], [1], [0, 0, 1, 1], [], []>} : vector<16x64xf32>, vector<64x32xf32>, vector<16x32xf32> -> vector<16x32xf32>
    %46 = tpu.reciprocal %45 {approx = true} : vector<16x32xf32> -> vector<16x32xf32>
    %47 = arith.mulf %44, %46 : vector<16x32xf32>
    %cst_29 = arith.constant dense<0.000000e+00> : vector<16x32xf32>
    %48 = tpu.matmul %47, %3, %cst_29 {dimension_numbers = #tpu.dot_dimension_numbers<[1], [0], [0], [1], [0, 0, 1, 1], [], []>} : vector<16x32xf32>, vector<32x32xf32>, vector<16x32xf32> -> vector<16x32xf32>
    %49 = vector.broadcast %10 : vector<1x32xf32> to vector<16x32xf32>
    %50 = arith.addf %48, %49 : vector<16x32xf32>
    %51 = arith.addf %25, %50 : vector<16x32xf32>
    %cst_30 = arith.constant dense<0.000000e+00> : vector<16xf32>
    %52 = vector.multi_reduction <add>, %51, %cst_30 [1] : vector<16x32xf32> to vector<16xf32>
    %53 = vector.shape_cast %52 : vector<16xf32> to vector<16x1xf32>
    %cst_31 = arith.constant 3.200000e+01 : f32
    %54 = vector.broadcast %cst_31 : f32 to vector<16x1xf32>
    %55 = arith.divf %53, %54 : vector<16x1xf32>
    %56 = vector.broadcast %55 : vector<16x1xf32> to vector<16x32xf32>
    %57 = arith.subf %51, %56 : vector<16x32xf32>
    %58 = arith.mulf %57, %57 : vector<16x32xf32>
    %cst_32 = arith.constant dense<0.000000e+00> : vector<16xf32>
    %59 = vector.multi_reduction <add>, %58, %cst_32 [1] : vector<16x32xf32> to vector<16xf32>
    %60 = vector.shape_cast %59 : vector<16xf32> to vector<16x1xf32>
    %cst_33 = arith.constant 3.200000e+01 : f32
    %61 = vector.broadcast %cst_33 : f32 to vector<16x1xf32>
    %62 = arith.divf %60, %61 : vector<16x1xf32>
    %63 = vector.broadcast %55 : vector<16x1xf32> to vector<16x32xf32>
    %64 = arith.subf %51, %63 : vector<16x32xf32>
    %cst_34 = arith.constant 9.99999974E-6 : f32
    %65 = vector.broadcast %cst_34 : f32 to vector<16x1xf32>
    %66 = arith.addf %62, %65 : vector<16x1xf32>
    %67 = math.rsqrt %66 : vector<16x1xf32>
    %68 = vector.broadcast %67 : vector<16x1xf32> to vector<16x32xf32>
    %69 = arith.mulf %64, %68 : vector<16x32xf32>
    %70 = vector.broadcast %11 : vector<1x32xf32> to vector<16x32xf32>
    %71 = arith.mulf %69, %70 : vector<16x32xf32>
    %72 = vector.broadcast %12 : vector<1x32xf32> to vector<16x32xf32>
    %73 = arith.addf %71, %72 : vector<16x32xf32>
    %cst_35 = arith.constant dense<0.000000e+00> : vector<16x64xf32>
    %74 = tpu.matmul %73, %4, %cst_35 {dimension_numbers = #tpu.dot_dimension_numbers<[1], [0], [0], [1], [0, 0, 1, 1], [], []>} : vector<16x32xf32>, vector<32x64xf32>, vector<16x64xf32> -> vector<16x64xf32>
    %75 = vector.broadcast %13 : vector<1x64xf32> to vector<16x64xf32>
    %76 = arith.addf %74, %75 : vector<16x64xf32>
    %cst_36 = arith.constant 0.000000e+00 : f32
    %77 = vector.broadcast %cst_36 : f32 to vector<16x64xf32>
    %78 = arith.maximumf %76, %77 : vector<16x64xf32>
    %cst_37 = arith.constant dense<0.000000e+00> : vector<16x32xf32>
    %79 = tpu.matmul %78, %5, %cst_37 {dimension_numbers = #tpu.dot_dimension_numbers<[1], [0], [0], [1], [0, 0, 1, 1], [], []>} : vector<16x64xf32>, vector<64x32xf32>, vector<16x32xf32> -> vector<16x32xf32>
    %80 = vector.broadcast %14 : vector<1x32xf32> to vector<16x32xf32>
    %81 = arith.addf %79, %80 : vector<16x32xf32>
    %82 = arith.addf %73, %81 : vector<16x32xf32>
    %cst_38 = arith.constant dense<0.000000e+00> : vector<16xf32>
    %83 = vector.multi_reduction <add>, %82, %cst_38 [1] : vector<16x32xf32> to vector<16xf32>
    %84 = vector.shape_cast %83 : vector<16xf32> to vector<16x1xf32>
    %cst_39 = arith.constant 3.200000e+01 : f32
    %85 = vector.broadcast %cst_39 : f32 to vector<16x1xf32>
    %86 = arith.divf %84, %85 : vector<16x1xf32>
    %87 = vector.broadcast %86 : vector<16x1xf32> to vector<16x32xf32>
    %88 = arith.subf %82, %87 : vector<16x32xf32>
    %89 = arith.mulf %88, %88 : vector<16x32xf32>
    %cst_40 = arith.constant dense<0.000000e+00> : vector<16xf32>
    %90 = vector.multi_reduction <add>, %89, %cst_40 [1] : vector<16x32xf32> to vector<16xf32>
    %91 = vector.shape_cast %90 : vector<16xf32> to vector<16x1xf32>
    %cst_41 = arith.constant 3.200000e+01 : f32
    %92 = vector.broadcast %cst_41 : f32 to vector<16x1xf32>
    %93 = arith.divf %91, %92 : vector<16x1xf32>
    %94 = vector.broadcast %86 : vector<16x1xf32> to vector<16x32xf32>
    %95 = arith.subf %82, %94 : vector<16x32xf32>
    %cst_42 = arith.constant 9.99999974E-6 : f32
    %96 = vector.broadcast %cst_42 : f32 to vector<16x1xf32>
    %97 = arith.addf %93, %96 : vector<16x1xf32>
    %98 = math.rsqrt %97 : vector<16x1xf32>
    %99 = vector.broadcast %98 : vector<16x1xf32> to vector<16x32xf32>
    %100 = arith.mulf %95, %99 : vector<16x32xf32>
    %101 = vector.broadcast %15 : vector<1x32xf32> to vector<16x32xf32>
    %102 = arith.mulf %100, %101 : vector<16x32xf32>
    %103 = vector.broadcast %16 : vector<1x32xf32> to vector<16x32xf32>
    %104 = arith.addf %102, %103 : vector<16x32xf32>
    %cst_43 = arith.constant dense<0.000000e+00> : vector<8x32xf32>
    %105 = tpu.matmul %22, %104, %cst_43 {dimension_numbers = #tpu.dot_dimension_numbers<[1], [0], [0], [1], [0, 0, 1, 1], [], []>} : vector<8x16xf32>, vector<16x32xf32>, vector<8x32xf32> -> vector<8x32xf32>
    %cst_44 = arith.constant dense<0.000000e+00> : vector<8x64xf32>
    %106 = tpu.matmul %105, %6, %cst_44 {dimension_numbers = #tpu.dot_dimension_numbers<[1], [0], [0], [1], [0, 0, 1, 1], [], []>} : vector<8x32xf32>, vector<32x64xf32>, vector<8x64xf32> -> vector<8x64xf32>
    %107 = vector.broadcast %17 : vector<1x64xf32> to vector<8x64xf32>
    %108 = arith.addf %106, %107 : vector<8x64xf32>
    %cst_45 = arith.constant 0.000000e+00 : f32
    %109 = vector.broadcast %cst_45 : f32 to vector<8x64xf32>
    %110 = arith.maximumf %108, %109 : vector<8x64xf32>
    %cst_46 = arith.constant dense<0.000000e+00> : vector<8x128xf32>
    %111 = tpu.matmul %110, %7, %cst_46 {dimension_numbers = #tpu.dot_dimension_numbers<[1], [0], [0], [1], [0, 0, 1, 1], [], []>} : vector<8x64xf32>, vector<64x128xf32>, vector<8x128xf32> -> vector<8x128xf32>
    %112 = vector.broadcast %18 : vector<1x128xf32> to vector<8x128xf32>
    %113 = arith.addf %111, %112 : vector<8x128xf32>
    %c0_47 = arith.constant 0 : index
    %c0_48 = arith.constant 0 : index
    %114 = vector.load %arg2[%c0_47, %c0_48] : memref<8x128xf32, #tpu.memory_space<vmem>>, vector<8x128xf32>
    tpu.vector_store %arg2[%c0_47, %c0_48], %113 {strides = array<i32>} : memref<8x128xf32, #tpu.memory_space<vmem>>, vector<8x128xf32>,
    return
  }
}

</mosaic_0001>

<llo_original>
// kernel: pretrained_transformer_model.1
$region0: #{pretrained_transformer_model.1}
  #allocation0 [shape = 'u32[]', space=smem, size = 0x4, offset = 0x4, fixed_abs, tag = 'smem constant byte address 0x4 - core index']
  #allocation1 [shape = 'u32[144,128]{1,0:T(1,128)}', space=vmem, size = 0x12000, scoped, tag = 'internal scratch']
  %s0 = inlined_call_operand.vmem [shape: f32[16,4], index: 0, kind: input, shape index: {}]
  %s1 = inlined_call_operand.hbm [shape: f32[400,128], index: 1, kind: input, shape index: {}]
  %s2 = inlined_call_operand.vmem [shape: f32[8,128], index: 2, kind: output, shape index: {}]
  %s3 = sld [smem:[#allocation0]]
  $region22: #{pretrained_transformer_model.1} parent=0
    _
  %s5 = ssub.s32 1, %s3
  %s6 = scalar_select 0, %s5, %s3
  $region1: #{pretrained_transformer_model.1} parent=0
    #allocation2 [shape = 'u8[204800]{0}', space=vmem, size = 0x32000, scoped, tag = 'input window, operand 1, single buffered']
    #allocation3 [shape = 's32[1]{0}', space=sflag, size = 0x4, scoped, tag = 'scoped memory for pretrained_transformer_model.1']
    %7 = vsyncpa [#allocation3], 0
    // Predicated region
    $region2: #{pretrained_transformer_model.1} parent=1 // pred_check
      _
    $region3: #{pretrained_transformer_model.1} parent=1 // pred_check_branch
      %9 = sbr.rel (0) target = $region5
    $region4: #{pretrained_transformer_model.1} parent=1 // pred_region
      _
    $region5: #{pretrained_transformer_model.1} parent=1 // pred_fallthru
      _
    // Predicated region
    $region6: #{pretrained_transformer_model.1} parent=1 // pred_check
      _
    $region7: #{pretrained_transformer_model.1} parent=1 // pred_check_branch
      %11 = sbr.rel (0) target = $region9
    $region8: #{pretrained_transformer_model.1} parent=1 // pred_region
      %s13 = ssub.s32 6400, 6400
      %14 = vsyncadd [#allocation3], %s13
      %s15 = sshll.u32 [#allocation2], 4
      %s16 = int_to_ptr.vmem [resolvable:$true] %s15
      %21 = dma.hbm_to_vmem [thread:$0]  %s1, 6400, %s16, [#allocation3], 128, 128, 8
    $region9: #{pretrained_transformer_model.1} parent=1 // pred_fallthru
      _
    // Predicated region
    $region10: #{pretrained_transformer_model.1} parent=1 // pred_check
      _
    $region11: #{pretrained_transformer_model.1} parent=1 // pred_check_branch
      %23 = sbr.rel (0) target = $region13
    $region12: #{pretrained_transformer_model.1} parent=1 // pred_region
      %24 = dma.done [#allocation3], 6400
    $region13: #{pretrained_transformer_model.1} parent=1 // pred_fallthru
      _
    %v25 = vld [vmem:[%s0] sm:$0xff]
    %v26 = vld [vmem:[%s0 + $0x8] sm:$0xff]
    %v27 = vld [vmem:[#allocation2] sm:$0xf]
    %v28 = vld [vmem:[#allocation2 + $0x8] sm:$0xff]
    %v29 = vld [vmem:[#allocation2 + $0x10] sm:$0xff]
    %v30 = vld [vmem:[#allocation2 + $0x18] sm:$0xff]
    %v31 = vld [vmem:[#allocation2 + $0x20] sm:$0xff]
    %v32 = vld [vmem:[#allocation2 + $0x28] sm:$0xff]
    %v33 = vld [vmem:[#allocation2 + $0x30] sm:$0xff]
    %v34 = vld [vmem:[#allocation2 + $0x38] sm:$0xff]
    %v35 = vld [vmem:[#allocation2 + $0x40] sm:$0xff]
    %v36 = vld [vmem:[#allocation2 + $0x48] sm:$0xff]
    %v37 = vld [vmem:[#allocation2 + $0x50] sm:$0xff]
    %v38 = vld [vmem:[#allocation2 + $0x58] sm:$0xff]
    %v39 = vld [vmem:[#allocation2 + $0x60] sm:$0xff]
    %v40 = vld [vmem:[#allocation2 + $0x68] sm:$0xff]
    %v41 = vld [vmem:[#allocation2 + $0x70] sm:$0xff]
    %v42 = vld [vmem:[#allocation2 + $0x78] sm:$0xff]
    %v43 = vld [vmem:[#allocation2 + $0x80] sm:$0xff]
    %v44 = vld [vmem:[#allocation2 + $0x88] sm:$0xff]
    %v45 = vld [vmem:[#allocation2 + $0x90] sm:$0xff]
    %v46 = vld [vmem:[#allocation2 + $0x98] sm:$0xff]
    %v47 = vld [vmem:[#allocation2 + $0xa0] sm:$0xff]
    %v48 = vld [vmem:[#allocation2 + $0xa8] sm:$0xff]
    %v49 = vld [vmem:[#allocation2 + $0xb0] sm:$0xff]
    %v50 = vld [vmem:[#allocation2 + $0xb8] sm:$0xff]
    %v51 = vld [vmem:[#allocation2 + $0xc0] sm:$0xff]
    %v52 = vld [vmem:[#allocation2 + $0xc8] sm:$0xff]
    %v53 = vld [vmem:[#allocation2 + $0xd0] sm:$0xff]
    %v54 = vld [vmem:[#allocation2 + $0xd8] sm:$0xff]
    %v55 = vld [vmem:[#allocation2 + $0xe0] sm:$0xff]
    %v56 = vld [vmem:[#allocation2 + $0xe8] sm:$0xff]
    %v57 = vld [vmem:[#allocation2 + $0xf0] sm:$0xff]
    %v58 = vld [vmem:[#allocation2 + $0xf8] sm:$0xff]
    %v59 = vld [vmem:[#allocation2 + $0x100] sm:$0xff]
    %v60 = vld [vmem:[#allocation2 + $0x108] sm:$0x1]
    %v61 = vld [vmem:[#allocation2 + $0x109] sm:$0x1]
    %v62 = vld [vmem:[#allocation2 + $0x10a] sm:$0x1]
    %v63 = vld [vmem:[#allocation2 + $0x10b] sm:$0x1]
    %v64 = vld [vmem:[#allocation2 + $0x10c] sm:$0x1]
    %v65 = vld [vmem:[#allocation2 + $0x10d] sm:$0x1]
    %v66 = vld [vmem:[#allocation2 + $0x10e] sm:$0x1]
    %v67 = vld [vmem:[#allocation2 + $0x10f] sm:$0x1]
    %v68 = vld [vmem:[#allocation2 + $0x110] sm:$0x1]
    %v69 = vld [vmem:[#allocation2 + $0x111] sm:$0x1]
    %v70 = vld [vmem:[#allocation2 + $0x112] sm:$0x1]
    %v71 = vld [vmem:[#allocation2 + $0x118] sm:$0xff]
    %v72 = vld [vmem:[#allocation2 + $0x120] sm:$0xff]
    %v73 = vld [vmem:[#allocation2 + $0x128] sm:$0xff]
    %v74 = vld [vmem:[#allocation2 + $0x130] sm:$0xff]
    %v75 = vld [vmem:[#allocation2 + $0x138] sm:$0xff]
    %v76 = vld [vmem:[#allocation2 + $0x140] sm:$0xff]
    %v77 = vld [vmem:[#allocation2 + $0x148] sm:$0xff]
    %v78 = vld [vmem:[#allocation2 + $0x150] sm:$0xff]
    %v79 = vld [vmem:[#allocation2 + $0x158] sm:$0xff]
    %v80 = vld [vmem:[#allocation2 + $0x160] sm:$0xff]
    %v81 = vld [vmem:[#allocation2 + $0x168] sm:$0xff]
    %v82 = vld [vmem:[#allocation2 + $0x170] sm:$0xff]
    %v83 = vld [vmem:[#allocation2 + $0x178] sm:$0xff]
    %v84 = vld [vmem:[#allocation2 + $0x180] sm:$0xff]
    %v85 = vld [vmem:[#allocation2 + $0x188] sm:$0xff]
    %v86 = vlaneseq
    %v87 = vshrl.u32 %v86, 7
    %v88 = vsub.s32 0, %v87
    %v89 = vrot.slane %v60, %v88
    %vm90 = vcmask 31744
    %v92 = vsel %vm90, %v25, 0
    %v95 = vsel %vm90, %v26, 0
    %vm97 = vcmask 1043456
    %v99 = vsel %vm97, %v27, 0
    %101 = vmatprep.subr.mxu0 0.0
    %102 = vmatpush1.msra.mxu0 0.0
    %103 = vmatprep.subr.mxu0 0.0
    %104 = vmatpush1.msra.mxu0 0.0
    %105 = vmatprep.subr.mxu0 0.0
    %106 = vmatpush1.msra.mxu0 0.0
    %107 = vmatprep.subr.mxu0 0.0
    %108 = vmatpush1.msra.mxu0 0.0
    %109 = vmatprep.subr.mxu0 0.0
    %110 = vmatpush1.msra.mxu0 0.0
    %111 = vmatprep.subr.mxu0 0.0
    %112 = vmatpush1.msra.mxu0 0.0
    %113 = vmatprep.subr.mxu0 0.0
    %114 = vmatpush1.msra.mxu0 0.0
    %115 = vmatprep.subr.mxu0 0.0
    %116 = vmatpush1.msra.mxu0 0.0
    %117 = vmatprep.subr.mxu0 0.0
    %118 = vmatpush1.msra.mxu0 0.0
    %119 = vmatprep.subr.mxu0 0.0
    %120 = vmatpush1.msra.mxu0 0.0
    %121 = vmatprep.subr.mxu0 0.0
    %122 = vmatpush1.msra.mxu0 0.0
    %123 = vmatprep.subr.mxu0 0.0
    %124 = vmatpush1.msra.mxu0 0.0
    %125 = vmatprep.subr.mxu0 0.0
    %126 = vmatpush1.msra.mxu0 0.0
    %127 = vmatprep.subr.mxu0 0.0
    %128 = vmatpush1.msra.mxu0 0.0
    %129 = vmatprep.subr.mxu0 0.0
    %130 = vmatpush1.msra.mxu0 0.0
    %131 = vmatprep.subr.mxu0 0.0
    %132 = vmatpush1.msra.mxu0 %v99
    %133 = vmatprep.subr.mxu0 0.0
    %134 = vmatpush2.msra.mxu0 0.0
    %135 = vmatprep.subr.mxu0 0.0
    %136 = vmatpush2.msra.mxu0 0.0
    %137 = vmatprep.subr.mxu0 0.0
    %138 = vmatpush2.msra.mxu0 0.0
    %139 = vmatprep.subr.mxu0 0.0
    %140 = vmatpush2.msra.mxu0 0.0
    %141 = vmatprep.subr.mxu0 0.0
    %142 = vmatpush2.msra.mxu0 0.0
    %143 = vmatprep.subr.mxu0 0.0
    %144 = vmatpush2.msra.mxu0 0.0
    %145 = vmatprep.subr.mxu0 0.0
    %146 = vmatpush2.msra.mxu0 0.0
    %147 = vmatprep.subr.mxu0 0.0
    %148 = vmatpush2.msra.mxu0 0.0
    %149 = vmatprep.subr.mxu0 0.0
    %150 = vmatpush2.msra.mxu0 0.0
    %151 = vmatprep.subr.mxu0 0.0
    %152 = vmatpush2.msra.mxu0 0.0
    %153 = vmatprep.subr.mxu0 0.0
    %154 = vmatpush2.msra.mxu0 0.0
    %155 = vmatprep.subr.mxu0 0.0
    %156 = vmatpush2.msra.mxu0 0.0
    %157 = vmatprep.subr.mxu0 0.0
    %158 = vmatpush2.msra.mxu0 0.0
    %159 = vmatprep.subr.mxu0 0.0
    %160 = vmatpush2.msra.mxu0 0.0
    %161 = vmatprep.subr.mxu0 0.0
    %162 = vmatpush2.msra.mxu0 0.0
    %163 = vmatprep.subr.mxu0 0.0
    %164 = vmatpush2.msra.mxu0 0.0
    %165 = vmatprep.mubr.f32.mxu0 0.0
    %166 = vmatmul.mubr.f32.gmra.mxu0 %v92
    %v167 = vpop.f32.mrf.mxu0
    %v168 = vadd.f32 %v89, %v167
    %v169 = vpop.f32.mrf.mxu0
    %170 = vmatprep.mubr.f32.mxu0 0.0
    %171 = vmatmul.mubr.f32.gmra.mxu0 %v95
    %v172 = vpop.f32.mrf.mxu0
    %v173 = vadd.f32 %v89, %v172
    %v174 = vpop.f32.mrf.mxu0
    %175 = vdwg.mxu0
    %v176 = vlaneseq
    %v177 = vshrl.u32 %v176, 7
    %v178 = vsub.s32 0, %v177
    %v179 = vrot.slane %v61, %v178
    %vm180 = vcmask 261120
    %v182 = vsel %vm180, %v168, 0
    %v185 = vsel %vm180, %v173, 0
    %187 = vmatprep.subr.mxu0 0.0
    %188 = vmatpush1.msra.mxu0 0.0
    %189 = vmatprep.subr.mxu0 0.0
    %190 = vmatpush1.msra.mxu0 0.0
    %191 = vmatprep.subr.mxu0 0.0
    %192 = vmatpush1.msra.mxu0 0.0
    %193 = vmatprep.subr.mxu0 0.0
    %194 = vmatpush1.msra.mxu0 0.0
    %195 = vmatprep.subr.mxu0 0.0
    %196 = vmatpush1.msra.mxu0 0.0
    %197 = vmatprep.subr.mxu0 0.0
    %198 = vmatpush1.msra.mxu0 0.0
    %199 = vmatprep.subr.mxu0 0.0
    %200 = vmatpush1.msra.mxu0 0.0
    %201 = vmatprep.subr.mxu0 0.0
    %202 = vmatpush1.msra.mxu0 0.0
    %203 = vmatprep.subr.mxu0 0.0
    %204 = vmatpush1.msra.mxu0 0.0
    %205 = vmatprep.subr.mxu0 0.0
    %206 = vmatpush1.msra.mxu0 0.0
    %207 = vmatprep.subr.mxu0 0.0
    %208 = vmatpush1.msra.mxu0 0.0
    %209 = vmatprep.subr.mxu0 0.0
    %210 = vmatpush1.msra.mxu0 0.0
    %211 = vmatprep.subr.mxu0 0.0
    %212 = vmatpush1.msra.mxu0 %v31
    %213 = vmatprep.subr.mxu0 0.0
    %214 = vmatpush1.msra.mxu0 %v30
    %215 = vmatprep.subr.mxu0 0.0
    %216 = vmatpush1.msra.mxu0 %v29
    %217 = vmatprep.subr.mxu0 0.0
    %218 = vmatpush1.msra.mxu0 %v28
    %219 = vmatprep.subr.mxu0 0.0
    %220 = vmatpush2.msra.mxu0 0.0
    %221 = vmatprep.subr.mxu0 0.0
    %222 = vmatpush2.msra.mxu0 0.0
    %223 = vmatprep.subr.mxu0 0.0
    %224 = vmatpush2.msra.mxu0 0.0
    %225 = vmatprep.subr.mxu0 0.0
    %226 = vmatpush2.msra.mxu0 0.0
    %227 = vmatprep.subr.mxu0 0.0
    %228 = vmatpush2.msra.mxu0 0.0
    %229 = vmatprep.subr.mxu0 0.0
    %230 = vmatpush2.msra.mxu0 0.0
    %231 = vmatprep.subr.mxu0 0.0
    %232 = vmatpush2.msra.mxu0 0.0
    %233 = vmatprep.subr.mxu0 0.0
    %234 = vmatpush2.msra.mxu0 0.0
    %235 = vmatprep.subr.mxu0 0.0
    %236 = vmatpush2.msra.mxu0 0.0
    %237 = vmatprep.subr.mxu0 0.0
    %238 = vmatpush2.msra.mxu0 0.0
    %239 = vmatprep.subr.mxu0 0.0
    %240 = vmatpush2.msra.mxu0 0.0
    %241 = vmatprep.subr.mxu0 0.0
    %242 = vmatpush2.msra.mxu0 0.0
    %243 = vmatprep.subr.mxu0 0.0
    %244 = vmatpush2.msra.mxu0 0.0
    %245 = vmatprep.subr.mxu0 0.0
    %246 = vmatpush2.msra.mxu0 0.0
    %247 = vmatprep.subr.mxu0 0.0
    %248 = vmatpush2.msra.mxu0 0.0
    %249 = vmatprep.subr.mxu0 0.0
    %250 = vmatpush2.msra.mxu0 0.0
    %251 = vmatprep.mubr.f32.mxu0 0.0
    %252 = vmatmul.mubr.f32.gmra.mxu0 %v182
    %v253 = vpop.f32.mrf.mxu0
    %v254 = vadd.f32 %v179, %v253
    %v255 = vpop.f32.mrf.mxu0
    %256 = vmatprep.mubr.f32.mxu0 0.0
    %257 = vmatmul.mubr.f32.gmra.mxu0 %v185
    %v258 = vpop.f32.mrf.mxu0
    %v259 = vadd.f32 %v179, %v258
    %v260 = vpop.f32.mrf.mxu0
    %261 = vdwg.mxu0
    %264 = vrot.lane.b32.xlu0 %v254, 96
    %v265 = vpop.permute.xlu0 %264
    %266 = vrot.lane.b32.xlu0 %v259, 96
    %v267 = vpop.permute.xlu0 %266
    %270 = vxpose.xlu0.b32.start [1/16] %v265, 128
    %271 = vxpose.xlu0.b32.cont [2/16] %v267, 128
    %272 = vxpose.xlu0.b32.cont [3/16] 0.0, 128
    %273 = vxpose.xlu0.b32.cont [4/16] 0.0, 128
    %274 = vxpose.xlu0.b32.cont [5/16] 0.0, 128
    %275 = vxpose.xlu0.b32.cont [6/16] 0.0, 128
    %276 = vxpose.xlu0.b32.cont [7/16] 0.0, 128
    %277 = vxpose.xlu0.b32.cont [8/16] 0.0, 128
    %278 = vxpose.xlu0.b32.cont [9/16] 0.0, 128
    %279 = vxpose.xlu0.b32.cont [10/16] 0.0, 128
    %280 = vxpose.xlu0.b32.cont [11/16] 0.0, 128
    %281 = vxpose.xlu0.b32.cont [12/16] 0.0, 128
    %282 = vxpose.xlu0.b32.cont [13/16] 0.0, 128
    %283 = vxpose.xlu0.b32.cont [14/16] 0.0, 128
    %284 = vxpose.xlu0.b32.cont [15/16] 0.0, 128
    %285 = vxpose.xlu0.b32.end [16/16] 0.0, 128
    %v286 = vpop.trf.xlu0
    %v287 = vpop.trf.xlu0
    %v288 = vpop.trf.xlu0
    %v289 = vpop.trf.xlu0
    %v290 = vpop.trf.xlu0
    %v291 = vpop.trf.xlu0
    %v292 = vpop.trf.xlu0
    %v293 = vpop.trf.xlu0
    %v294 = vpop.trf.xlu0
    %v295 = vpop.trf.xlu0
    %v296 = vpop.trf.xlu0
    %v297 = vpop.trf.xlu0
    %v298 = vpop.trf.xlu0
    %v299 = vpop.trf.xlu0
    %v300 = vpop.trf.xlu0
    %v301 = vpop.trf.xlu0
    %306 = vrot.lane.b32.xlu0 %v286, 16
    %v307 = vpop.permute.xlu0 %306
    %308 = vrot.lane.b32.xlu0 %v287, 16
    %v309 = vpop.permute.xlu0 %308
    %310 = vrot.lane.b32.xlu0 %v288, 16
    %v311 = vpop.permute.xlu0 %310
    %312 = vrot.lane.b32.xlu0 %v289, 16
    %v313 = vpop.permute.xlu0 %312
    %318 = vrot.lane.b32.xlu0 %v286, 32
    %v319 = vpop.permute.xlu0 %318
    %320 = vrot.lane.b32.xlu0 %v287, 32
    %v321 = vpop.permute.xlu0 %320
    %322 = vrot.lane.b32.xlu0 %v288, 32
    %v323 = vpop.permute.xlu0 %322
    %324 = vrot.lane.b32.xlu0 %v289, 32
    %v325 = vpop.permute.xlu0 %324
    %330 = vrot.lane.b32.xlu0 %v286, 48
    %v331 = vpop.permute.xlu0 %330
    %332 = vrot.lane.b32.xlu0 %v287, 48
    %v333 = vpop.permute.xlu0 %332
    %334 = vrot.lane.b32.xlu0 %v288, 48
    %v335 = vpop.permute.xlu0 %334
    %336 = vrot.lane.b32.xlu0 %v289, 48
    %v337 = vpop.permute.xlu0 %336
    %vm342 = vcmask 130048
    %v343 = vsel %vm342, %v286, %v307
    %v344 = vsel %vm342, %v287, %v309
    %v345 = vsel %vm342, %v288, %v311
    %v346 = vsel %vm342, %v289, %v313
    %v347 = vsel %vm180, %v343, %v319
    %v348 = vsel %vm180, %v344, %v321
    %v349 = vsel %vm180, %v345, %v323
    %v350 = vsel %vm180, %v346, %v325
    %vm351 = vcmask 392192
    %v352 = vsel %vm351, %v347, %v331
    %v353 = vsel %vm351, %v348, %v333
    %v354 = vsel %vm351, %v349, %v335
    %v355 = vsel %vm351, %v350, %v337
    %v356 = vmul.f32 %v352, %v71
    %v357 = vmul.f32 %v353, %v72
    %v358 = vmul.f32 %v354, %v73
    %v359 = vmul.f32 %v355, %v74
    %368 = vrot.lane.b32.xlu0 %v75, 64
    %v369 = vpop.permute.xlu0 %368
    %370 = vrot.lane.b32.xlu0 %v76, 64
    %v371 = vpop.permute.xlu0 %370
    %372 = vrot.lane.b32.xlu0 %v77, 64
    %v373 = vpop.permute.xlu0 %372
    %374 = vrot.lane.b32.xlu0 %v78, 64
    %v375 = vpop.permute.xlu0 %374
    %376 = vrot.lane.b32.xlu0 %v79, 64
    %v377 = vpop.permute.xlu0 %376
    %378 = vrot.lane.b32.xlu0 %v80, 64
    %v379 = vpop.permute.xlu0 %378
    %380 = vrot.lane.b32.xlu0 %v81, 64
    %v381 = vpop.permute.xlu0 %380
    %382 = vrot.lane.b32.xlu0 %v82, 64
    %v383 = vpop.permute.xlu0 %382
    %v392 = vmul.f32 %v254, %v369
    %v393 = vmul.f32 %v259, %v371
    %v394 = vmul.f32 %v254, %v373
    %v395 = vmul.f32 %v259, %v375
    %v396 = vmul.f32 %v254, %v377
    %v397 = vmul.f32 %v259, %v379
    %v398 = vmul.f32 %v254, %v381
    %v399 = vmul.f32 %v259, %v383
    %v400 = vsel %vm180, %v254, 0
    %v402 = vsel %vm180, %v259, 0
    %404 = vmatprep.subr.mxu0 0.0
    %405 = vmatpush1.msra.mxu0 0.0
    %406 = vmatprep.subr.mxu0 0.0
    %407 = vmatpush1.msra.mxu0 0.0
    %408 = vmatprep.subr.mxu0 0.0
    %409 = vmatpush1.msra.mxu0 0.0
    %410 = vmatprep.subr.mxu0 0.0
    %411 = vmatpush1.msra.mxu0 0.0
    %412 = vmatprep.subr.mxu0 0.0
    %413 = vmatpush1.msra.mxu0 0.0
    %414 = vmatprep.subr.mxu0 0.0
    %415 = vmatpush1.msra.mxu0 0.0
    %416 = vmatprep.subr.mxu0 0.0
    %417 = vmatpush1.msra.mxu0 0.0
    %418 = vmatprep.subr.mxu0 0.0
    %419 = vmatpush1.msra.mxu0 0.0
    %420 = vmatprep.subr.mxu0 0.0
    %421 = vmatpush1.msra.mxu0 0.0
    %422 = vmatprep.subr.mxu0 0.0
    %423 = vmatpush1.msra.mxu0 0.0
    %424 = vmatprep.subr.mxu0 0.0
    %425 = vmatpush1.msra.mxu0 0.0
    %426 = vmatprep.subr.mxu0 0.0
    %427 = vmatpush1.msra.mxu0 0.0
    %428 = vmatprep.subr.mxu0 0.0
    %429 = vmatpush1.msra.mxu0 %v359
    %430 = vmatprep.subr.mxu0 0.0
    %431 = vmatpush1.msra.mxu0 %v358
    %432 = vmatprep.subr.mxu0 0.0
    %433 = vmatpush1.msra.mxu0 %v357
    %434 = vmatprep.subr.mxu0 0.0
    %435 = vmatpush1.msra.mxu0 %v356
    %436 = vmatprep.subr.mxu0 0.0
    %437 = vmatpush2.msra.mxu0 0.0
    %438 = vmatprep.subr.mxu0 0.0
    %439 = vmatpush2.msra.mxu0 0.0
    %440 = vmatprep.subr.mxu0 0.0
    %441 = vmatpush2.msra.mxu0 0.0
    %442 = vmatprep.subr.mxu0 0.0
    %443 = vmatpush2.msra.mxu0 0.0
    %444 = vmatprep.subr.mxu0 0.0
    %445 = vmatpush2.msra.mxu0 0.0
    %446 = vmatprep.subr.mxu0 0.0
    %447 = vmatpush2.msra.mxu0 0.0
    %448 = vmatprep.subr.mxu0 0.0
    %449 = vmatpush2.msra.mxu0 0.0
    %450 = vmatprep.subr.mxu0 0.0
    %451 = vmatpush2.msra.mxu0 0.0
    %452 = vmatprep.subr.mxu0 0.0
    %453 = vmatpush2.msra.mxu0 0.0
    %454 = vmatprep.subr.mxu0 0.0
    %455 = vmatpush2.msra.mxu0 0.0
    %456 = vmatprep.subr.mxu0 0.0
    %457 = vmatpush2.msra.mxu0 0.0
    %458 = vmatprep.subr.mxu0 0.0
    %459 = vmatpush2.msra.mxu0 0.0
    %460 = vmatprep.subr.mxu0 0.0
    %461 = vmatpush2.msra.mxu0 0.0
    %462 = vmatprep.subr.mxu0 0.0
    %463 = vmatpush2.msra.mxu0 0.0
    %464 = vmatprep.subr.mxu0 0.0
    %465 = vmatpush2.msra.mxu0 0.0
    %466 = vmatprep.subr.mxu0 0.0
    %467 = vmatpush2.msra.mxu0 0.0
    %468 = vmatprep.mubr.f32.mxu0 0.0
    %469 = vmatmul.mubr.f32.gmra.mxu0 %v400
    %v470 = vpop.f32.mrf.mxu0
    %v471 = vadd.f32 %v83, %v470
    %v472 = vpop.f32.mrf.mxu0
    %473 = vmatprep.mubr.f32.mxu0 0.0
    %474 = vmatmul.mubr.f32.gmra.mxu0 %v402
    %v475 = vpop.f32.mrf.mxu0
    %v476 = vadd.f32 %v84, %v475
    %v477 = vpop.f32.mrf.mxu0
    %478 = vdwg.mxu0
    %vm479 = vcmask 523264
    %v480 = vsel %vm479, %v471, -inf
    %481 = vmax.xlane.f32.xlu0 %v480
    %v482 = vpop.xlane.xlu0 %481
    %v483 = vsel %vm479, %v476, -inf
    %484 = vmax.xlane.f32.xlu0 %v483
    %v485 = vpop.xlane.xlu0 %484
    %v486 = vsub.f32 %v471, %v482
    %v487 = vsub.f32 %v476, %v485
    %v488 = vmul.f32 %v486, 1.442695
    %v489 = vpow.pop %v488
    %v490 = vmul.f32 %v487, 1.442695
    %v491 = vpow.pop %v490
    %500 = vrot.lane.b32.xlu0 %v392, 64
    %v501 = vpop.permute.xlu0 %500
    %502 = vrot.lane.b32.xlu0 %v393, 64
    %v503 = vpop.permute.xlu0 %502
    %504 = vrot.lane.b32.xlu0 %v394, 64
    %v505 = vpop.permute.xlu0 %504
    %506 = vrot.lane.b32.xlu0 %v395, 64
    %v507 = vpop.permute.xlu0 %506
    %508 = vrot.lane.b32.xlu0 %v396, 64
    %v509 = vpop.permute.xlu0 %508
    %510 = vrot.lane.b32.xlu0 %v397, 64
    %v511 = vpop.permute.xlu0 %510
    %512 = vrot.lane.b32.xlu0 %v398, 64
    %v513 = vpop.permute.xlu0 %512
    %514 = vrot.lane.b32.xlu0 %v399, 64
    %v515 = vpop.permute.xlu0 %514
    %v525 = vsel %vm479, %v489, 0
    %v528 = vsel %vm479, %v491, 0
    %530 = vmatprep.subr.mxu0 0.0
    %531 = vmatpush1.msra.mxu0 0.0
    %532 = vmatprep.subr.mxu0 0.0
    %533 = vmatpush1.msra.mxu0 0.0
    %534 = vmatprep.subr.mxu0 0.0
    %535 = vmatpush1.msra.mxu0 0.0
    %536 = vmatprep.subr.mxu0 0.0
    %537 = vmatpush1.msra.mxu0 0.0
    %538 = vmatprep.subr.mxu0 0.0
    %539 = vmatpush1.msra.mxu0 0.0
    %540 = vmatprep.subr.mxu0 0.0
    %541 = vmatpush1.msra.mxu0 0.0
    %542 = vmatprep.subr.mxu0 0.0
    %543 = vmatpush1.msra.mxu0 0.0
    %544 = vmatprep.subr.mxu0 0.0
    %545 = vmatpush1.msra.mxu0 0.0
    %546 = vmatprep.subr.mxu0 0.0
    %547 = vmatpush1.msra.mxu0 %v515
    %548 = vmatprep.subr.mxu0 0.0
    %549 = vmatpush1.msra.mxu0 %v513
    %550 = vmatprep.subr.mxu0 0.0
    %551 = vmatpush1.msra.mxu0 %v511
    %552 = vmatprep.subr.mxu0 0.0
    %553 = vmatpush1.msra.mxu0 %v509
    %554 = vmatprep.subr.mxu0 0.0
    %555 = vmatpush1.msra.mxu0 %v507
    %556 = vmatprep.subr.mxu0 0.0
    %557 = vmatpush1.msra.mxu0 %v505
    %558 = vmatprep.subr.mxu0 0.0
    %559 = vmatpush1.msra.mxu0 %v503
    %560 = vmatprep.subr.mxu0 0.0
    %561 = vmatpush1.msra.mxu0 %v501
    %562 = vmatprep.subr.mxu0 0.0
    %563 = vmatpush2.msra.mxu0 0.0
    %564 = vmatprep.subr.mxu0 0.0
    %565 = vmatpush2.msra.mxu0 0.0
    %566 = vmatprep.subr.mxu0 0.0
    %567 = vmatpush2.msra.mxu0 0.0
    %568 = vmatprep.subr.mxu0 0.0
    %569 = vmatpush2.msra.mxu0 0.0
    %570 = vmatprep.subr.mxu0 0.0
    %571 = vmatpush2.msra.mxu0 0.0
    %572 = vmatprep.subr.mxu0 0.0
    %573 = vmatpush2.msra.mxu0 0.0
    %574 = vmatprep.subr.mxu0 0.0
    %575 = vmatpush2.msra.mxu0 0.0
    %576 = vmatprep.subr.mxu0 0.0
    %577 = vmatpush2.msra.mxu0 0.0
    %578 = vmatprep.subr.mxu0 0.0
    %579 = vmatpush2.msra.mxu0 0.0
    %580 = vmatprep.subr.mxu0 0.0
    %581 = vmatpush2.msra.mxu0 0.0
    %582 = vmatprep.subr.mxu0 0.0
    %583 = vmatpush2.msra.mxu0 0.0
    %584 = vmatprep.subr.mxu0 0.0
    %585 = vmatpush2.msra.mxu0 0.0
    %586 = vmatprep.subr.mxu0 0.0
    %587 = vmatpush2.msra.mxu0 0.0
    %588 = vmatprep.subr.mxu0 0.0
    %589 = vmatpush2.msra.mxu0 0.0
    %590 = vmatprep.subr.mxu0 0.0
    %591 = vmatpush2.msra.mxu0 0.0
    %592 = vmatprep.subr.mxu0 0.0
    %593 = vmatpush2.msra.mxu0 0.0
    %594 = vmatprep.mubr.f32.mxu0 0.0
    %595 = vmatmul.mubr.f32.gmra.mxu0 %v525
    %v596 = vpop.f32.mrf.mxu0
    %v597 = vadd.f32 0.0, %v596
    %v598 = vpop.f32.mrf.mxu0
    %599 = vmatprep.mubr.f32.mxu0 0.0
    %600 = vmatmul.mubr.f32.gmra.mxu0 %v528
    %v601 = vpop.f32.mrf.mxu0
    %v602 = vadd.f32 0.0, %v601
    %v603 = vpop.f32.mrf.mxu0
    %604 = vdwg.mxu0
    %605 = vmatprep.subr.mxu0 0.0
    %606 = vmatpush1.msra.mxu0 0.0
    %607 = vmatprep.subr.mxu0 0.0
    %608 = vmatpush1.msra.mxu0 0.0
    %609 = vmatprep.subr.mxu0 0.0
    %610 = vmatpush1.msra.mxu0 0.0
    %611 = vmatprep.subr.mxu0 0.0
    %612 = vmatpush1.msra.mxu0 0.0
    %613 = vmatprep.subr.mxu0 0.0
    %614 = vmatpush1.msra.mxu0 0.0
    %615 = vmatprep.subr.mxu0 0.0
    %616 = vmatpush1.msra.mxu0 0.0
    %617 = vmatprep.subr.mxu0 0.0
    %618 = vmatpush1.msra.mxu0 0.0
    %619 = vmatprep.subr.mxu0 0.0
    %620 = vmatpush1.msra.mxu0 0.0
    %621 = vmatprep.subr.mxu0 0.0
    %622 = vmatpush1.msra.mxu0 %v82
    %623 = vmatprep.subr.mxu0 0.0
    %624 = vmatpush1.msra.mxu0 %v81
    %625 = vmatprep.subr.mxu0 0.0
    %626 = vmatpush1.msra.mxu0 %v80
    %627 = vmatprep.subr.mxu0 0.0
    %628 = vmatpush1.msra.mxu0 %v79
    %629 = vmatprep.subr.mxu0 0.0
    %630 = vmatpush1.msra.mxu0 %v78
    %631 = vmatprep.subr.mxu0 0.0
    %632 = vmatpush1.msra.mxu0 %v77
    %633 = vmatprep.subr.mxu0 0.0
    %634 = vmatpush1.msra.mxu0 %v76
    %635 = vmatprep.subr.mxu0 0.0
    %636 = vmatpush1.msra.mxu0 %v75
    %637 = vmatprep.subr.mxu0 0.0
    %638 = vmatpush2.msra.mxu0 0.0
    %639 = vmatprep.subr.mxu0 0.0
    %640 = vmatpush2.msra.mxu0 0.0
    %641 = vmatprep.subr.mxu0 0.0
    %642 = vmatpush2.msra.mxu0 0.0
    %643 = vmatprep.subr.mxu0 0.0
    %644 = vmatpush2.msra.mxu0 0.0
    %645 = vmatprep.subr.mxu0 0.0
    %646 = vmatpush2.msra.mxu0 0.0
    %647 = vmatprep.subr.mxu0 0.0
    %648 = vmatpush2.msra.mxu0 0.0
    %649 = vmatprep.subr.mxu0 0.0
    %650 = vmatpush2.msra.mxu0 0.0
    %651 = vmatprep.subr.mxu0 0.0
    %652 = vmatpush2.msra.mxu0 0.0
    %653 = vmatprep.subr.mxu0 0.0
    %654 = vmatpush2.msra.mxu0 0.0
    %655 = vmatprep.subr.mxu0 0.0
    %656 = vmatpush2.msra.mxu0 0.0
    %657 = vmatprep.subr.mxu0 0.0
    %658 = vmatpush2.msra.mxu0 0.0
    %659 = vmatprep.subr.mxu0 0.0
    %660 = vmatpush2.msra.mxu0 0.0
    %661 = vmatprep.subr.mxu0 0.0
    %662 = vmatpush2.msra.mxu0 0.0
    %663 = vmatprep.subr.mxu0 0.0
    %664 = vmatpush2.msra.mxu0 0.0
    %665 = vmatprep.subr.mxu0 0.0
    %666 = vmatpush2.msra.mxu0 0.0
    %667 = vmatprep.subr.mxu0 0.0
    %668 = vmatpush2.msra.mxu0 0.0
    %669 = vmatprep.mubr.f32.mxu0 0.0
    %670 = vmatmul.mubr.f32.gmra.mxu0 %v525
    %v671 = vpop.f32.mrf.mxu0
    %v672 = vadd.f32 0.0, %v671
    %v673 = vpop.f32.mrf.mxu0
    %674 = vmatprep.mubr.f32.mxu0 0.0
    %675 = vmatmul.mubr.f32.gmra.mxu0 %v528
    %v676 = vpop.f32.mrf.mxu0
    %v677 = vadd.f32 0.0, %v676
    %v678 = vpop.f32.mrf.mxu0
    %679 = vdwg.mxu0
    %v680 = vrcp.pop %v672
    %v681 = vrcp.pop %v677
    %v682 = vmul.f32 %v597, %v680
    %v683 = vmul.f32 %v602, %v681
    %v684 = vlaneseq
    %v685 = vshrl.u32 %v684, 7
    %v686 = vsub.s32 0, %v685
    %v687 = vrot.slane %v62, %v686
    %v689 = vsel %vm180, %v682, 0
    %v692 = vsel %vm180, %v683, 0
    %694 = vmatprep.subr.mxu0 0.0
    %695 = vmatpush1.msra.mxu0 0.0
    %696 = vmatprep.subr.mxu0 0.0
    %697 = vmatpush1.msra.mxu0 0.0
    %698 = vmatprep.subr.mxu0 0.0
    %699 = vmatpush1.msra.mxu0 0.0
    %700 = vmatprep.subr.mxu0 0.0
    %701 = vmatpush1.msra.mxu0 0.0
    %702 = vmatprep.subr.mxu0 0.0
    %703 = vmatpush1.msra.mxu0 0.0
    %704 = vmatprep.subr.mxu0 0.0
    %705 = vmatpush1.msra.mxu0 0.0
    %706 = vmatprep.subr.mxu0 0.0
    %707 = vmatpush1.msra.mxu0 0.0
    %708 = vmatprep.subr.mxu0 0.0
    %709 = vmatpush1.msra.mxu0 0.0
    %710 = vmatprep.subr.mxu0 0.0
    %711 = vmatpush1.msra.mxu0 0.0
    %712 = vmatprep.subr.mxu0 0.0
    %713 = vmatpush1.msra.mxu0 0.0
    %714 = vmatprep.subr.mxu0 0.0
    %715 = vmatpush1.msra.mxu0 0.0
    %716 = vmatprep.subr.mxu0 0.0
    %717 = vmatpush1.msra.mxu0 0.0
    %718 = vmatprep.subr.mxu0 0.0
    %719 = vmatpush1.msra.mxu0 %v35
    %720 = vmatprep.subr.mxu0 0.0
    %721 = vmatpush1.msra.mxu0 %v34
    %722 = vmatprep.subr.mxu0 0.0
    %723 = vmatpush1.msra.mxu0 %v33
    %724 = vmatprep.subr.mxu0 0.0
    %725 = vmatpush1.msra.mxu0 %v32
    %726 = vmatprep.subr.mxu0 0.0
    %727 = vmatpush2.msra.mxu0 0.0
    %728 = vmatprep.subr.mxu0 0.0
    %729 = vmatpush2.msra.mxu0 0.0
    %730 = vmatprep.subr.mxu0 0.0
    %731 = vmatpush2.msra.mxu0 0.0
    %732 = vmatprep.subr.mxu0 0.0
    %733 = vmatpush2.msra.mxu0 0.0
    %734 = vmatprep.subr.mxu0 0.0
    %735 = vmatpush2.msra.mxu0 0.0
    %736 = vmatprep.subr.mxu0 0.0
    %737 = vmatpush2.msra.mxu0 0.0
    %738 = vmatprep.subr.mxu0 0.0
    %739 = vmatpush2.msra.mxu0 0.0
    %740 = vmatprep.subr.mxu0 0.0
    %741 = vmatpush2.msra.mxu0 0.0
    %742 = vmatprep.subr.mxu0 0.0
    %743 = vmatpush2.msra.mxu0 0.0
    %744 = vmatprep.subr.mxu0 0.0
    %745 = vmatpush2.msra.mxu0 0.0
    %746 = vmatprep.subr.mxu0 0.0
    %747 = vmatpush2.msra.mxu0 0.0
    %748 = vmatprep.subr.mxu0 0.0
    %749 = vmatpush2.msra.mxu0 0.0
    %750 = vmatprep.subr.mxu0 0.0
    %751 = vmatpush2.msra.mxu0 0.0
    %752 = vmatprep.subr.mxu0 0.0
    %753 = vmatpush2.msra.mxu0 0.0
    %754 = vmatprep.subr.mxu0 0.0
    %755 = vmatpush2.msra.mxu0 0.0
    %756 = vmatprep.subr.mxu0 0.0
    %757 = vmatpush2.msra.mxu0 0.0
    %758 = vmatprep.mubr.f32.mxu0 0.0
    %759 = vmatmul.mubr.f32.gmra.mxu0 %v689
    %v760 = vpop.f32.mrf.mxu0
    %v761 = vadd.f32 %v687, %v760
    %v762 = vpop.f32.mrf.mxu0
    %763 = vmatprep.mubr.f32.mxu0 0.0
    %764 = vmatmul.mubr.f32.gmra.mxu0 %v692
    %v765 = vpop.f32.mrf.mxu0
    %v766 = vadd.f32 %v687, %v765
    %v767 = vpop.f32.mrf.mxu0
    %768 = vdwg.mxu0
    %v769 = vadd.f32 %v168, %v761
    %v770 = vadd.f32 %v173, %v766
    %v771 = vsel %vm180, %v769, 0.0
    %772 = vadd.xlane.f32.xlu0 %v771
    %v773 = vpop.xlane.xlu0 %772
    %v774 = vsel %vm180, %v770, 0.0
    %775 = vadd.xlane.f32.xlu0 %v774
    %v776 = vpop.xlane.xlu0 %775
    %v777 = vrcp.pop 32.0
    %v778 = vmul.f32 %v773, %v777
    %v779 = vmul.f32 %v776, %v777
    %v780 = vsub.f32 %v769, %v778
    %v781 = vsub.f32 %v770, %v779
    %v782 = vmul.f32 %v780, %v780
    %v783 = vmul.f32 %v781, %v781
    %v784 = vsel %vm180, %v782, 0.0
    %785 = vadd.xlane.f32.xlu0 %v784
    %v786 = vpop.xlane.xlu0 %785
    %v787 = vsel %vm180, %v783, 0.0
    %788 = vadd.xlane.f32.xlu0 %v787
    %v789 = vpop.xlane.xlu0 %788
    %v790 = vmul.f32 %v786, %v777
    %v791 = vmul.f32 %v789, %v777
    %v792 = vadd.f32 %v790, 1e-05
    %v793 = vadd.f32 %v791, 1e-05
    %v794 = vrsqrt.pop %v792
    %v795 = vrsqrt.pop %v793
    %v796 = vmul.f32 %v780, %v794
    %v797 = vmul.f32 %v781, %v795
    %v798 = vlaneseq
    %v799 = vshrl.u32 %v798, 7
    %v800 = vsub.s32 0, %v799
    %v801 = vrot.slane %v63, %v800
    %v802 = vmul.f32 %v796, %v801
    %v803 = vmul.f32 %v797, %v801
    %v804 = vlaneseq
    %v805 = vshrl.u32 %v804, 7
    %v806 = vsub.s32 0, %v805
    %v807 = vrot.slane %v64, %v806
    %v808 = vadd.f32 %v802, %v807
    %v809 = vadd.f32 %v803, %v807
    %v810 = vlaneseq
    %v811 = vshrl.u32 %v810, 7
    %v812 = vsub.s32 0, %v811
    %v813 = vrot.slane %v65, %v812
    %v815 = vsel %vm180, %v808, 0
    %v818 = vsel %vm180, %v809, 0
    %820 = vmatprep.subr.mxu0 0.0
    %821 = vmatpush1.msra.mxu0 0.0
    %822 = vmatprep.subr.mxu0 0.0
    %823 = vmatpush1.msra.mxu0 0.0
    %824 = vmatprep.subr.mxu0 0.0
    %825 = vmatpush1.msra.mxu0 0.0
    %826 = vmatprep.subr.mxu0 0.0
    %827 = vmatpush1.msra.mxu0 0.0
    %828 = vmatprep.subr.mxu0 0.0
    %829 = vmatpush1.msra.mxu0 0.0
    %830 = vmatprep.subr.mxu0 0.0
    %831 = vmatpush1.msra.mxu0 0.0
    %832 = vmatprep.subr.mxu0 0.0
    %833 = vmatpush1.msra.mxu0 0.0
    %834 = vmatprep.subr.mxu0 0.0
    %835 = vmatpush1.msra.mxu0 0.0
    %836 = vmatprep.subr.mxu0 0.0
    %837 = vmatpush1.msra.mxu0 0.0
    %838 = vmatprep.subr.mxu0 0.0
    %839 = vmatpush1.msra.mxu0 0.0
    %840 = vmatprep.subr.mxu0 0.0
    %841 = vmatpush1.msra.mxu0 0.0
    %842 = vmatprep.subr.mxu0 0.0
    %843 = vmatpush1.msra.mxu0 0.0
    %844 = vmatprep.subr.mxu0 0.0
    %845 = vmatpush1.msra.mxu0 %v39
    %846 = vmatprep.subr.mxu0 0.0
    %847 = vmatpush1.msra.mxu0 %v38
    %848 = vmatprep.subr.mxu0 0.0
    %849 = vmatpush1.msra.mxu0 %v37
    %850 = vmatprep.subr.mxu0 0.0
    %851 = vmatpush1.msra.mxu0 %v36
    %852 = vmatprep.subr.mxu0 0.0
    %853 = vmatpush2.msra.mxu0 0.0
    %854 = vmatprep.subr.mxu0 0.0
    %855 = vmatpush2.msra.mxu0 0.0
    %856 = vmatprep.subr.mxu0 0.0
    %857 = vmatpush2.msra.mxu0 0.0
    %858 = vmatprep.subr.mxu0 0.0
    %859 = vmatpush2.msra.mxu0 0.0
    %860 = vmatprep.subr.mxu0 0.0
    %861 = vmatpush2.msra.mxu0 0.0
    %862 = vmatprep.subr.mxu0 0.0
    %863 = vmatpush2.msra.mxu0 0.0
    %864 = vmatprep.subr.mxu0 0.0
    %865 = vmatpush2.msra.mxu0 0.0
    %866 = vmatprep.subr.mxu0 0.0
    %867 = vmatpush2.msra.mxu0 0.0
    %868 = vmatprep.subr.mxu0 0.0
    %869 = vmatpush2.msra.mxu0 0.0
    %870 = vmatprep.subr.mxu0 0.0
    %871 = vmatpush2.msra.mxu0 0.0
    %872 = vmatprep.subr.mxu0 0.0
    %873 = vmatpush2.msra.mxu0 0.0
    %874 = vmatprep.subr.mxu0 0.0
    %875 = vmatpush2.msra.mxu0 0.0
    %876 = vmatprep.subr.mxu0 0.0
    %877 = vmatpush2.msra.mxu0 0.0
    %878 = vmatprep.subr.mxu0 0.0
    %879 = vmatpush2.msra.mxu0 0.0
    %880 = vmatprep.subr.mxu0 0.0
    %881 = vmatpush2.msra.mxu0 0.0
    %882 = vmatprep.subr.mxu0 0.0
    %883 = vmatpush2.msra.mxu0 0.0
    %884 = vmatprep.mubr.f32.mxu0 0.0
    %885 = vmatmul.mubr.f32.gmra.mxu0 %v815
    %v886 = vpop.f32.mrf.mxu0
    %v887 = vadd.f32 %v813, %v886
    %v888 = vpop.f32.mrf.mxu0
    %889 = vmatprep.mubr.f32.mxu0 0.0
    %890 = vmatmul.mubr.f32.gmra.mxu0 %v818
    %v891 = vpop.f32.mrf.mxu0
    %v892 = vadd.f32 %v813, %v891
    %v893 = vpop.f32.mrf.mxu0
    %894 = vdwg.mxu0
    %v895 = vmax.f32 %v887, 0.0
    %v896 = vmax.f32 %v892, 0.0
    %v897 = vlaneseq
    %v898 = vshrl.u32 %v897, 7
    %v899 = vsub.s32 0, %v898
    %v900 = vrot.slane %v66, %v899
    %v902 = vsel %vm479, %v895, 0
    %v905 = vsel %vm479, %v896, 0
    %907 = vmatprep.subr.mxu0 0.0
    %908 = vmatpush1.msra.mxu0 0.0
    %909 = vmatprep.subr.mxu0 0.0
    %910 = vmatpush1.msra.mxu0 0.0
    %911 = vmatprep.subr.mxu0 0.0
    %912 = vmatpush1.msra.mxu0 0.0
    %913 = vmatprep.subr.mxu0 0.0
    %914 = vmatpush1.msra.mxu0 0.0
    %915 = vmatprep.subr.mxu0 0.0
    %916 = vmatpush1.msra.mxu0 0.0
    %917 = vmatprep.subr.mxu0 0.0
    %918 = vmatpush1.msra.mxu0 0.0
    %919 = vmatprep.subr.mxu0 0.0
    %920 = vmatpush1.msra.mxu0 0.0
    %921 = vmatprep.subr.mxu0 0.0
    %922 = vmatpush1.msra.mxu0 0.0
    %923 = vmatprep.subr.mxu0 0.0
    %924 = vmatpush1.msra.mxu0 %v47
    %925 = vmatprep.subr.mxu0 0.0
    %926 = vmatpush1.msra.mxu0 %v46
    %927 = vmatprep.subr.mxu0 0.0
    %928 = vmatpush1.msra.mxu0 %v45
    %929 = vmatprep.subr.mxu0 0.0
    %930 = vmatpush1.msra.mxu0 %v44
    %931 = vmatprep.subr.mxu0 0.0
    %932 = vmatpush1.msra.mxu0 %v43
    %933 = vmatprep.subr.mxu0 0.0
    %934 = vmatpush1.msra.mxu0 %v42
    %935 = vmatprep.subr.mxu0 0.0
    %936 = vmatpush1.msra.mxu0 %v41
    %937 = vmatprep.subr.mxu0 0.0
    %938 = vmatpush1.msra.mxu0 %v40
    %939 = vmatprep.subr.mxu0 0.0
    %940 = vmatpush2.msra.mxu0 0.0
    %941 = vmatprep.subr.mxu0 0.0
    %942 = vmatpush2.msra.mxu0 0.0
    %943 = vmatprep.subr.mxu0 0.0
    %944 = vmatpush2.msra.mxu0 0.0
    %945 = vmatprep.subr.mxu0 0.0
    %946 = vmatpush2.msra.mxu0 0.0
    %947 = vmatprep.subr.mxu0 0.0
    %948 = vmatpush2.msra.mxu0 0.0
    %949 = vmatprep.subr.mxu0 0.0
    %950 = vmatpush2.msra.mxu0 0.0
    %951 = vmatprep.subr.mxu0 0.0
    %952 = vmatpush2.msra.mxu0 0.0
    %953 = vmatprep.subr.mxu0 0.0
    %954 = vmatpush2.msra.mxu0 0.0
    %955 = vmatprep.subr.mxu0 0.0
    %956 = vmatpush2.msra.mxu0 0.0
    %957 = vmatprep.subr.mxu0 0.0
    %958 = vmatpush2.msra.mxu0 0.0
    %959 = vmatprep.subr.mxu0 0.0
    %960 = vmatpush2.msra.mxu0 0.0
    %961 = vmatprep.subr.mxu0 0.0
    %962 = vmatpush2.msra.mxu0 0.0
    %963 = vmatprep.subr.mxu0 0.0
    %964 = vmatpush2.msra.mxu0 0.0
    %965 = vmatprep.subr.mxu0 0.0
    %966 = vmatpush2.msra.mxu0 0.0
    %967 = vmatprep.subr.mxu0 0.0
    %968 = vmatpush2.msra.mxu0 0.0
    %969 = vmatprep.subr.mxu0 0.0
    %970 = vmatpush2.msra.mxu0 0.0
    %971 = vmatprep.mubr.f32.mxu0 0.0
    %972 = vmatmul.mubr.f32.gmra.mxu0 %v902
    %v973 = vpop.f32.mrf.mxu0
    %v974 = vadd.f32 %v900, %v973
    %v975 = vpop.f32.mrf.mxu0
    %976 = vmatprep.mubr.f32.mxu0 0.0
    %977 = vmatmul.mubr.f32.gmra.mxu0 %v905
    %v978 = vpop.f32.mrf.mxu0
    %v979 = vadd.f32 %v900, %v978
    %v980 = vpop.f32.mrf.mxu0
    %981 = vdwg.mxu0
    %v982 = vadd.f32 %v808, %v974
    %v983 = vadd.f32 %v809, %v979
    %v984 = vsel %vm180, %v982, 0.0
    %985 = vadd.xlane.f32.xlu0 %v984
    %v986 = vpop.xlane.xlu0 %985
    %v987 = vsel %vm180, %v983, 0.0
    %988 = vadd.xlane.f32.xlu0 %v987
    %v989 = vpop.xlane.xlu0 %988
    %v990 = vmul.f32 %v986, %v777
    %v991 = vmul.f32 %v989, %v777
    %v992 = vsub.f32 %v982, %v990
    %v993 = vsub.f32 %v983, %v991
    %v994 = vmul.f32 %v992, %v992
    %v995 = vmul.f32 %v993, %v993
    %v996 = vsel %vm180, %v994, 0.0
    %997 = vadd.xlane.f32.xlu0 %v996
    %v998 = vpop.xlane.xlu0 %997
    %v999 = vsel %vm180, %v995, 0.0
    %1000 = vadd.xlane.f32.xlu0 %v999
    %v1001 = vpop.xlane.xlu0 %1000
    %v1002 = vmul.f32 %v998, %v777
    %v1003 = vmul.f32 %v1001, %v777
    %v1004 = vadd.f32 %v1002, 1e-05
    %v1005 = vadd.f32 %v1003, 1e-05
    %v1006 = vrsqrt.pop %v1004
    %v1007 = vrsqrt.pop %v1005
    %v1008 = vmul.f32 %v992, %v1006
    %v1009 = vmul.f32 %v993, %v1007
    %v1010 = vlaneseq
    %v1011 = vshrl.u32 %v1010, 7
    %v1012 = vsub.s32 0, %v1011
    %v1013 = vrot.slane %v67, %v1012
    %v1014 = vmul.f32 %v1008, %v1013
    %v1015 = vmul.f32 %v1009, %v1013
    %v1016 = vlaneseq
    %v1017 = vshrl.u32 %v1016, 7
    %v1018 = vsub.s32 0, %v1017
    %v1019 = vrot.slane %v68, %v1018
    %v1020 = vadd.f32 %v1014, %v1019
    %v1021 = vadd.f32 %v1015, %v1019
    %v1023 = vsel %vm342, %v85, 0
    %1025 = vmatprep.subr.mxu0 0.0
    %1026 = vmatpush1.msra.mxu0 0.0
    %1027 = vmatprep.subr.mxu0 0.0
    %1028 = vmatpush1.msra.mxu0 0.0
    %1029 = vmatprep.subr.mxu0 0.0
    %1030 = vmatpush1.msra.mxu0 0.0
    %1031 = vmatprep.subr.mxu0 0.0
    %1032 = vmatpush1.msra.mxu0 0.0
    %1033 = vmatprep.subr.mxu0 0.0
    %1034 = vmatpush1.msra.mxu0 0.0
    %1035 = vmatprep.subr.mxu0 0.0
    %1036 = vmatpush1.msra.mxu0 0.0
    %1037 = vmatprep.subr.mxu0 0.0
    %1038 = vmatpush1.msra.mxu0 0.0
    %1039 = vmatprep.subr.mxu0 0.0
    %1040 = vmatpush1.msra.mxu0 0.0
    %1041 = vmatprep.subr.mxu0 0.0
    %1042 = vmatpush1.msra.mxu0 0.0
    %1043 = vmatprep.subr.mxu0 0.0
    %1044 = vmatpush1.msra.mxu0 0.0
    %1045 = vmatprep.subr.mxu0 0.0
    %1046 = vmatpush1.msra.mxu0 0.0
    %1047 = vmatprep.subr.mxu0 0.0
    %1048 = vmatpush1.msra.mxu0 0.0
    %1049 = vmatprep.subr.mxu0 0.0
    %1050 = vmatpush1.msra.mxu0 0.0
    %1051 = vmatprep.subr.mxu0 0.0
    %1052 = vmatpush1.msra.mxu0 0.0
    %1053 = vmatprep.subr.mxu0 0.0
    %1054 = vmatpush1.msra.mxu0 %v1021
    %1055 = vmatprep.subr.mxu0 0.0
    %1056 = vmatpush1.msra.mxu0 %v1020
    %1057 = vmatprep.subr.mxu0 0.0
    %1058 = vmatpush2.msra.mxu0 0.0
    %1059 = vmatprep.subr.mxu0 0.0
    %1060 = vmatpush2.msra.mxu0 0.0
    %1061 = vmatprep.subr.mxu0 0.0
    %1062 = vmatpush2.msra.mxu0 0.0
    %1063 = vmatprep.subr.mxu0 0.0
    %1064 = vmatpush2.msra.mxu0 0.0
    %1065 = vmatprep.subr.mxu0 0.0
    %1066 = vmatpush2.msra.mxu0 0.0
    %1067 = vmatprep.subr.mxu0 0.0
    %1068 = vmatpush2.msra.mxu0 0.0
    %1069 = vmatprep.subr.mxu0 0.0
    %1070 = vmatpush2.msra.mxu0 0.0
    %1071 = vmatprep.subr.mxu0 0.0
    %1072 = vmatpush2.msra.mxu0 0.0
    %1073 = vmatprep.subr.mxu0 0.0
    %1074 = vmatpush2.msra.mxu0 0.0
    %1075 = vmatprep.subr.mxu0 0.0
    %1076 = vmatpush2.msra.mxu0 0.0
    %1077 = vmatprep.subr.mxu0 0.0
    %1078 = vmatpush2.msra.mxu0 0.0
    %1079 = vmatprep.subr.mxu0 0.0
    %1080 = vmatpush2.msra.mxu0 0.0
    %1081 = vmatprep.subr.mxu0 0.0
    %1082 = vmatpush2.msra.mxu0 0.0
    %1083 = vmatprep.subr.mxu0 0.0
    %1084 = vmatpush2.msra.mxu0 0.0
    %1085 = vmatprep.subr.mxu0 0.0
    %1086 = vmatpush2.msra.mxu0 0.0
    %1087 = vmatprep.subr.mxu0 0.0
    %1088 = vmatpush2.msra.mxu0 0.0
    %1089 = vmatprep.mubr.f32.mxu0 0.0
    %1090 = vmatmul.mubr.f32.gmra.mxu0 %v1023
    %v1091 = vpop.f32.mrf.mxu0
    %v1092 = vadd.f32 0.0, %v1091
    %v1093 = vpop.f32.mrf.mxu0
    %1094 = vdwg.mxu0
    %v1095 = vlaneseq
    %v1096 = vshrl.u32 %v1095, 7
    %v1097 = vsub.s32 0, %v1096
    %v1098 = vrot.slane %v69, %v1097
    %v1100 = vsel %vm180, %v1092, 0
    %1102 = vmatprep.subr.mxu0 0.0
    %1103 = vmatpush1.msra.mxu0 0.0
    %1104 = vmatprep.subr.mxu0 0.0
    %1105 = vmatpush1.msra.mxu0 0.0
    %1106 = vmatprep.subr.mxu0 0.0
    %1107 = vmatpush1.msra.mxu0 0.0
    %1108 = vmatprep.subr.mxu0 0.0
    %1109 = vmatpush1.msra.mxu0 0.0
    %1110 = vmatprep.subr.mxu0 0.0
    %1111 = vmatpush1.msra.mxu0 0.0
    %1112 = vmatprep.subr.mxu0 0.0
    %1113 = vmatpush1.msra.mxu0 0.0
    %1114 = vmatprep.subr.mxu0 0.0
    %1115 = vmatpush1.msra.mxu0 0.0
    %1116 = vmatprep.subr.mxu0 0.0
    %1117 = vmatpush1.msra.mxu0 0.0
    %1118 = vmatprep.subr.mxu0 0.0
    %1119 = vmatpush1.msra.mxu0 0.0
    %1120 = vmatprep.subr.mxu0 0.0
    %1121 = vmatpush1.msra.mxu0 0.0
    %1122 = vmatprep.subr.mxu0 0.0
    %1123 = vmatpush1.msra.mxu0 0.0
    %1124 = vmatprep.subr.mxu0 0.0
    %1125 = vmatpush1.msra.mxu0 0.0
    %1126 = vmatprep.subr.mxu0 0.0
    %1127 = vmatpush1.msra.mxu0 %v51
    %1128 = vmatprep.subr.mxu0 0.0
    %1129 = vmatpush1.msra.mxu0 %v50
    %1130 = vmatprep.subr.mxu0 0.0
    %1131 = vmatpush1.msra.mxu0 %v49
    %1132 = vmatprep.subr.mxu0 0.0
    %1133 = vmatpush1.msra.mxu0 %v48
    %1134 = vmatprep.subr.mxu0 0.0
    %1135 = vmatpush2.msra.mxu0 0.0
    %1136 = vmatprep.subr.mxu0 0.0
    %1137 = vmatpush2.msra.mxu0 0.0
    %1138 = vmatprep.subr.mxu0 0.0
    %1139 = vmatpush2.msra.mxu0 0.0
    %1140 = vmatprep.subr.mxu0 0.0
    %1141 = vmatpush2.msra.mxu0 0.0
    %1142 = vmatprep.subr.mxu0 0.0
    %1143 = vmatpush2.msra.mxu0 0.0
    %1144 = vmatprep.subr.mxu0 0.0
    %1145 = vmatpush2.msra.mxu0 0.0
    %1146 = vmatprep.subr.mxu0 0.0
    %1147 = vmatpush2.msra.mxu0 0.0
    %1148 = vmatprep.subr.mxu0 0.0
    %1149 = vmatpush2.msra.mxu0 0.0
    %1150 = vmatprep.subr.mxu0 0.0
    %1151 = vmatpush2.msra.mxu0 0.0
    %1152 = vmatprep.subr.mxu0 0.0
    %1153 = vmatpush2.msra.mxu0 0.0
    %1154 = vmatprep.subr.mxu0 0.0
    %1155 = vmatpush2.msra.mxu0 0.0
    %1156 = vmatprep.subr.mxu0 0.0
    %1157 = vmatpush2.msra.mxu0 0.0
    %1158 = vmatprep.subr.mxu0 0.0
    %1159 = vmatpush2.msra.mxu0 0.0
    %1160 = vmatprep.subr.mxu0 0.0
    %1161 = vmatpush2.msra.mxu0 0.0
    %1162 = vmatprep.subr.mxu0 0.0
    %1163 = vmatpush2.msra.mxu0 0.0
    %1164 = vmatprep.subr.mxu0 0.0
    %1165 = vmatpush2.msra.mxu0 0.0
    %1166 = vmatprep.mubr.f32.mxu0 0.0
    %1167 = vmatmul.mubr.f32.gmra.mxu0 %v1100
    %v1168 = vpop.f32.mrf.mxu0
    %v1169 = vadd.f32 %v1098, %v1168
    %v1170 = vpop.f32.mrf.mxu0
    %1171 = vdwg.mxu0
    %v1172 = vmax.f32 %v1169, 0.0
    %v1173 = vlaneseq
    %v1174 = vshrl.u32 %v1173, 7
    %v1175 = vsub.s32 0, %v1174
    %v1176 = vrot.slane %v70, %v1175
    %v1178 = vsel %vm479, %v1172, 0
    %1180 = vmatprep.subr.mxu0 0.0
    %1181 = vmatpush1.msra.mxu0 0.0
    %1182 = vmatprep.subr.mxu0 0.0
    %1183 = vmatpush1.msra.mxu0 0.0
    %1184 = vmatprep.subr.mxu0 0.0
    %1185 = vmatpush1.msra.mxu0 0.0
    %1186 = vmatprep.subr.mxu0 0.0
    %1187 = vmatpush1.msra.mxu0 0.0
    %1188 = vmatprep.subr.mxu0 0.0
    %1189 = vmatpush1.msra.mxu0 0.0
    %1190 = vmatprep.subr.mxu0 0.0
    %1191 = vmatpush1.msra.mxu0 0.0
    %1192 = vmatprep.subr.mxu0 0.0
    %1193 = vmatpush1.msra.mxu0 0.0
    %1194 = vmatprep.subr.mxu0 0.0
    %1195 = vmatpush1.msra.mxu0 0.0
    %1196 = vmatprep.subr.mxu0 0.0
    %1197 = vmatpush1.msra.mxu0 %v59
    %1198 = vmatprep.subr.mxu0 0.0
    %1199 = vmatpush1.msra.mxu0 %v58
    %1200 = vmatprep.subr.mxu0 0.0
    %1201 = vmatpush1.msra.mxu0 %v57
    %1202 = vmatprep.subr.mxu0 0.0
    %1203 = vmatpush1.msra.mxu0 %v56
    %1204 = vmatprep.subr.mxu0 0.0
    %1205 = vmatpush1.msra.mxu0 %v55
    %1206 = vmatprep.subr.mxu0 0.0
    %1207 = vmatpush1.msra.mxu0 %v54
    %1208 = vmatprep.subr.mxu0 0.0
    %1209 = vmatpush1.msra.mxu0 %v53
    %1210 = vmatprep.subr.mxu0 0.0
    %1211 = vmatpush1.msra.mxu0 %v52
    %1212 = vmatprep.subr.mxu0 0.0
    %1213 = vmatpush2.msra.mxu0 0.0
    %1214 = vmatprep.subr.mxu0 0.0
    %1215 = vmatpush2.msra.mxu0 0.0
    %1216 = vmatprep.subr.mxu0 0.0
    %1217 = vmatpush2.msra.mxu0 0.0
    %1218 = vmatprep.subr.mxu0 0.0
    %1219 = vmatpush2.msra.mxu0 0.0
    %1220 = vmatprep.subr.mxu0 0.0
    %1221 = vmatpush2.msra.mxu0 0.0
    %1222 = vmatprep.subr.mxu0 0.0
    %1223 = vmatpush2.msra.mxu0 0.0
    %1224 = vmatprep.subr.mxu0 0.0
    %1225 = vmatpush2.msra.mxu0 0.0
    %1226 = vmatprep.subr.mxu0 0.0
    %1227 = vmatpush2.msra.mxu0 0.0
    %1228 = vmatprep.subr.mxu0 0.0
    %1229 = vmatpush2.msra.mxu0 0.0
    %1230 = vmatprep.subr.mxu0 0.0
    %1231 = vmatpush2.msra.mxu0 0.0
    %1232 = vmatprep.subr.mxu0 0.0
    %1233 = vmatpush2.msra.mxu0 0.0
    %1234 = vmatprep.subr.mxu0 0.0
    %1235 = vmatpush2.msra.mxu0 0.0
    %1236 = vmatprep.subr.mxu0 0.0
    %1237 = vmatpush2.msra.mxu0 0.0
    %1238 = vmatprep.subr.mxu0 0.0
    %1239 = vmatpush2.msra.mxu0 0.0
    %1240 = vmatprep.subr.mxu0 0.0
    %1241 = vmatpush2.msra.mxu0 0.0
    %1242 = vmatprep.subr.mxu0 0.0
    %1243 = vmatpush2.msra.mxu0 0.0
    %1244 = vmatprep.mubr.f32.mxu0 0.0
    %1245 = vmatmul.mubr.f32.gmra.mxu0 %v1178
    %v1246 = vpop.f32.mrf.mxu0
    %v1247 = vadd.f32 %v1176, %v1246
    %v1248 = vpop.f32.mrf.mxu0
    %1249 = vdwg.mxu0
    %1250 = vst [vmem:[%s2] sm:$0xff] %v1247
    // Predicated region
    $region14: #{pretrained_transformer_model.1} parent=1 // pred_check
      _
    $region15: #{pretrained_transformer_model.1} parent=1 // pred_check_branch
      %1252 = sbr.rel (0) target = $region17
    $region16: #{pretrained_transformer_model.1} parent=1 // pred_region
      _
    $region17: #{pretrained_transformer_model.1} parent=1 // pred_fallthru
      _
    // Predicated region
    $region18: #{pretrained_transformer_model.1} parent=1 // pred_check
      _
    $region19: #{pretrained_transformer_model.1} parent=1 // pred_check_branch
      %1254 = sbr.rel (0) target = $region21
    $region20: #{pretrained_transformer_model.1} parent=1 // pred_region
      _
    $region21: #{pretrained_transformer_model.1} parent=1 // pred_fallthru
      _
    %1255 = vsyncpa [#allocation3], 1

</llo_original>
